<compile_context>
chip_gen: v7x
topology: tpu7x:2x2x1
jax: 0.10.0
libtpu: 0.0.40
codegen_flags: <defaults>
</compile_context>

<pallas_src>
import functools
import math

import jax
import jax.numpy as jnp
from jax import lax
from jax.experimental import pallas as pl
from jax.experimental.pallas import tpu as pltpu


# --------------------------------------------------------------------------
# Fused multi-head attention kernel
# --------------------------------------------------------------------------

def _mha_fused_kernel(q_ref, k_ref, v_ref,
                      wq_ref, bq_ref, wk_ref, bk_ref, wv_ref, bv_ref,
                      wm_ref, bm_ref, o_ref, *, num_heads):
    # One (batch, query-row-tile) step: QKV projections -> per-head attention
    # -> merge projection, everything resident in VMEM.
    x_q = q_ref[0]                     # (Tn, D)  bf16
    x_k = k_ref[0]                     # (M,  D)  bf16
    x_v = v_ref[0]                     # (M,  D)  bf16

    # QKV projections (1/sqrt(Dh) pre-folded into wq/bq on the host).
    qp = (jnp.dot(x_q, wq_ref[...], preferred_element_type=jnp.float32)
          + bq_ref[...]).astype(jnp.bfloat16)          # (Tn, D)
    kp = (jnp.dot(x_k, wk_ref[...], preferred_element_type=jnp.float32)
          + bk_ref[...]).astype(jnp.bfloat16)          # (M, D)
    vp = (jnp.dot(x_v, wv_ref[...], preferred_element_type=jnp.float32)
          + bv_ref[...]).astype(jnp.bfloat16)          # (M, D)

    tn, d = qp.shape
    dh = d // num_heads

    # Merge projection accumulated per head:
    #   concat_h(o_h) @ Wm == sum_h o_h @ Wm[h]   (avoids an in-kernel concat)
    acc = jnp.zeros((tn, d), jnp.float32)
    for h in range(num_heads):
        sl = slice(h * dh, (h + 1) * dh)
        # scores: contraction over Dh, no explicit transpose of K.
        s = lax.dot_general(qp[:, sl], kp[:, sl],
                            dimension_numbers=(((1,), (1,)), ((), ())),
                            preferred_element_type=jnp.float32)      # (Tn, M)
        s = s - jnp.max(s, axis=-1, keepdims=True)
        p = jnp.exp(s)
        p = p * pl.reciprocal(jnp.sum(p, axis=-1, keepdims=True), approx=True)
        o_h = jnp.dot(p.astype(jnp.bfloat16), vp[:, sl],
                      preferred_element_type=jnp.float32)            # (Tn, Dh)
        acc = acc + jnp.dot(o_h.astype(jnp.bfloat16), wm_ref[h],
                            preferred_element_type=jnp.float32)      # (Tn, D)

    o_ref[0] = (acc + bm_ref[...]).astype(o_ref.dtype)


def _pick_row_tile(n, target=256):
    # Full block at small N; otherwise a multiple of 8 that divides N.
    if n <= target:
        return n
    t = (target // 8) * 8
    while t >= 8:
        if n % t == 0:
            return t
        t -= 8
    return n


def multi_headed_attention(params, query, key, value):
    """Fused MHA. query:(B,N,D), key/value:(B,M,D) -> (B,N,D) float32."""
    num_heads = params["num_heads"]
    b, n, d = query.shape
    m = key.shape[1]
    dh = d // num_heads
    tn = _pick_row_tile(n)

    scale = dh ** -0.5
    bf16 = lambda x: x.astype(jnp.bfloat16)

    wq = bf16(params["wq"] * scale)                    # scale folded into Q
    bq = (params["bq"] * scale).reshape(1, d).astype(jnp.float32)
    wk = bf16(params["wk"])
    bk = params["bk"].reshape(1, d).astype(jnp.float32)
    wv = bf16(params["wv"])
    bv = params["bv"].reshape(1, d).astype(jnp.float32)
    # merge weight grouped by head along the input dim: (H, Dh, D)
    wm = bf16(params["wm"]).reshape(num_heads, dh, d)
    bm = params["bm"].reshape(1, d).astype(jnp.float32)

    kernel = functools.partial(_mha_fused_kernel, num_heads=num_heads)
    return pl.pallas_call(
        kernel,
        out_shape=jax.ShapeDtypeStruct((b, n, d), jnp.float32),
        grid=(b, n // tn),
        in_specs=[
            pl.BlockSpec((1, tn, d), lambda bi, i: (bi, i, 0)),          # query tile
            pl.BlockSpec((1, m, d), lambda bi, i: (bi, 0, 0)),           # full key
            pl.BlockSpec((1, m, d), lambda bi, i: (bi, 0, 0)),           # full value
            pl.BlockSpec((d, d), lambda bi, i: (0, 0)),                  # wq
            pl.BlockSpec((1, d), lambda bi, i: (0, 0)),                  # bq
            pl.BlockSpec((d, d), lambda bi, i: (0, 0)),                  # wk
            pl.BlockSpec((1, d), lambda bi, i: (0, 0)),                  # bk
            pl.BlockSpec((d, d), lambda bi, i: (0, 0)),                  # wv
            pl.BlockSpec((1, d), lambda bi, i: (0, 0)),                  # bv
            pl.BlockSpec((num_heads, dh, d), lambda bi, i: (0, 0, 0)),   # wm
            pl.BlockSpec((1, d), lambda bi, i: (0, 0)),                  # bm
        ],
        out_specs=pl.BlockSpec((1, tn, d), lambda bi, i: (bi, i, 0)),
        compiler_params=pltpu.CompilerParams(
            dimension_semantics=("parallel", "parallel")),
    )(bf16(query), bf16(key), bf16(value),
      wq, bq, wk, bk, wv, bv, wm, bm)


# --------------------------------------------------------------------------
# Parameter init (PyTorch nn.Linear default init, per-head then fused)
# --------------------------------------------------------------------------

def _linear_params(key, d_in, d_out):
    kw, kb = jax.random.split(key)
    bound = 1.0 / math.sqrt(d_in)
    w = jax.random.uniform(kw, (d_in, d_out), jnp.float32, -bound, bound)
    b = jax.random.uniform(kb, (d_out,), jnp.float32, -bound, bound)
    return w, b


def init_mha_params(key, d_model, num_heads):
    assert d_model % num_heads == 0
    dh = d_model // num_heads
    keys = jax.random.split(key, 3 * num_heads + 1)

    # per-head projQ/projK/projV Linears fused along the output dim; columns
    # [h*Dh:(h+1)*Dh] belong to head h — this matches torch.stack(..., dim=2)
    # followed by .view(b, -1, dim * num_heads).
    def fuse(off):
        ws, bs = zip(*[_linear_params(keys[off + h], d_model, dh)
                       for h in range(num_heads)])
        return jnp.concatenate(ws, axis=1), jnp.concatenate(bs, axis=0)

    wq, bq = fuse(0)
    wk, bk = fuse(num_heads)
    wv, bv = fuse(2 * num_heads)
    wm, bm = _linear_params(keys[3 * num_heads], d_model, d_model)
    return dict(num_heads=num_heads, wq=wq, bq=bq, wk=wk, bk=bk,
                wv=wv, bv=bv, wm=wm, bm=bm)


# --------------------------------------------------------------------------
# Pure-JAX reference (mirrors the torch module math, for a sanity check)
# --------------------------------------------------------------------------

def mha_reference(params, query, key, value):
    num_heads = params["num_heads"]
    bdim, n, d = query.shape
    m = key.shape[1]
    dh = d // num_heads
    q = query @ params["wq"] + params["bq"]
    k = key @ params["wk"] + params["bk"]
    v = value @ params["wv"] + params["bv"]
    qh = q.reshape(bdim, n, num_heads, dh)
    kh = k.reshape(bdim, m, num_heads, dh)
    vh = v.reshape(bdim, m, num_heads, dh)
    s = jnp.einsum("bnhd,bmhd->bhnm", qh, kh) / (dh ** 0.5)
    p = jax.nn.softmax(s, axis=-1)
    x = jnp.einsum("bhnm,bmhd->bnhd", p, vh).reshape(bdim, n, d)
    return x @ params["wm"] + params["bm"]


# --------------------------------------------------------------------------
# Main
# --------------------------------------------------------------------------

if __name__ == "__main__":
    B, N, M = 2, 8, 8
    d_model, num_heads = 32, 4

    root = jax.random.PRNGKey(0)
    kparam, kq, kk, kv = jax.random.split(root, 4)
    params = init_mha_params(kparam, d_model, num_heads)

    query = jax.random.normal(kq, (B, N, d_model), jnp.float32)
    key = jax.random.normal(kk, (B, M, d_model), jnp.float32)
    value = jax.random.normal(kv, (B, M, d_model), jnp.float32)

    out = multi_headed_attention(params, query, key, value)
    out = jax.block_until_ready(out)

    assert out.shape == (B, N, d_model), out.shape
    assert bool(jnp.all(jnp.isfinite(out)))

    ref = mha_reference(params, query, key, value)
    max_err = float(jnp.max(jnp.abs(out - ref)))
    assert max_err < 0.1, f"max abs error vs reference: {max_err}"

    print("KERNEL_OK")
</pallas_src>

<mosaic_0001>
module attributes {stable_mosaic.version = 11 : i64} {
  func.func @_mha_fused_kernel(%arg0: i32, %arg1: i32, %arg2: memref<1x8x32xbf16, #tpu.memory_space<vmem>>, %arg3: memref<1x8x32xbf16, #tpu.memory_space<vmem>>, %arg4: memref<1x8x32xbf16, #tpu.memory_space<vmem>>, %arg5: memref<32x32xbf16, #tpu.memory_space<vmem>>, %arg6: memref<1x32xf32, #tpu.memory_space<vmem>>, %arg7: memref<32x32xbf16, #tpu.memory_space<vmem>>, %arg8: memref<1x32xf32, #tpu.memory_space<vmem>>, %arg9: memref<32x32xbf16, #tpu.memory_space<vmem>>, %arg10: memref<1x32xf32, #tpu.memory_space<vmem>>, %arg11: memref<4x8x32xbf16, #tpu.memory_space<vmem>>, %arg12: memref<1x32xf32, #tpu.memory_space<vmem>>, %arg13: memref<1x8x32xf32, #tpu.memory_space<vmem>>) attributes {dimension_semantics = [#tpu.dimension_semantics<parallel>, #tpu.dimension_semantics<parallel>], iteration_bounds = array<i64: 2, 1>, scalar_prefetch = 0 : i64, scratch_operands = 0 : i64, tpu.core_type = #tpu.core_type<tc>, window_params = [{transform_indices = @transform_0, window_bounds = array<i64: 1, 8, 32>}, {transform_indices = @transform_1, window_bounds = array<i64: 1, 8, 32>}, {transform_indices = @transform_2, window_bounds = array<i64: 1, 8, 32>}, {pipeline_mode = #tpu.pipeline_mode<synchronous>, transform_indices = @transform_3, window_bounds = array<i64: 32, 32>}, {pipeline_mode = #tpu.pipeline_mode<synchronous>, transform_indices = @transform_4, window_bounds = array<i64: 1, 32>}, {pipeline_mode = #tpu.pipeline_mode<synchronous>, transform_indices = @transform_5, window_bounds = array<i64: 32, 32>}, {pipeline_mode = #tpu.pipeline_mode<synchronous>, transform_indices = @transform_6, window_bounds = array<i64: 1, 32>}, {pipeline_mode = #tpu.pipeline_mode<synchronous>, transform_indices = @transform_7, window_bounds = array<i64: 32, 32>}, {pipeline_mode = #tpu.pipeline_mode<synchronous>, transform_indices = @transform_8, window_bounds = array<i64: 1, 32>}, {pipeline_mode = #tpu.pipeline_mode<synchronous>, transform_indices = @transform_9, window_bounds = array<i64: 4, 8, 32>}, {pipeline_mode = #tpu.pipeline_mode<synchronous>, transform_indices = @transform_10, window_bounds = array<i64: 1, 32>}, {transform_indices = @transform_11, window_bounds = array<i64: 1, 8, 32>}]} {
    %c0 = arith.constant 0 : index
    %c0_0 = arith.constant 0 : index
    %c0_1 = arith.constant 0 : index
    %0 = vector.load %arg2[%c0, %c0_0, %c0_1] : memref<1x8x32xbf16, #tpu.memory_space<vmem>>, vector<1x8x32xbf16>
    %1 = vector.shape_cast %0 : vector<1x8x32xbf16> to vector<8x32xbf16>
    %c0_2 = arith.constant 0 : index
    %c0_3 = arith.constant 0 : index
    %c0_4 = arith.constant 0 : index
    %2 = vector.load %arg3[%c0_2, %c0_3, %c0_4] : memref<1x8x32xbf16, #tpu.memory_space<vmem>>, vector<1x8x32xbf16>
    %3 = vector.shape_cast %2 : vector<1x8x32xbf16> to vector<8x32xbf16>
    %c0_5 = arith.constant 0 : index
    %c0_6 = arith.constant 0 : index
    %c0_7 = arith.constant 0 : index
    %4 = vector.load %arg4[%c0_5, %c0_6, %c0_7] : memref<1x8x32xbf16, #tpu.memory_space<vmem>>, vector<1x8x32xbf16>
    %5 = vector.shape_cast %4 : vector<1x8x32xbf16> to vector<8x32xbf16>
    %c0_8 = arith.constant 0 : index
    %c0_9 = arith.constant 0 : index
    %6 = vector.load %arg5[%c0_8, %c0_9] : memref<32x32xbf16, #tpu.memory_space<vmem>>, vector<32x32xbf16>
    %cst = arith.constant dense<0.000000e+00> : vector<8x32xf32>
    %7 = tpu.matmul %1, %6, %cst {dimension_numbers = #tpu.dot_dimension_numbers<[1], [0], [0], [1], [0, 0, 1, 1], [], []>} : vector<8x32xbf16>, vector<32x32xbf16>, vector<8x32xf32> -> vector<8x32xf32>
    %c0_10 = arith.constant 0 : index
    %c0_11 = arith.constant 0 : index
    %8 = vector.load %arg6[%c0_10, %c0_11] : memref<1x32xf32, #tpu.memory_space<vmem>>, vector<1x32xf32>
    %9 = vector.broadcast %8 : vector<1x32xf32> to vector<8x32xf32>
    %10 = arith.addf %7, %9 : vector<8x32xf32>
    %11 = arith.truncf %10 : vector<8x32xf32> to vector<8x32xbf16>
    %c0_12 = arith.constant 0 : index
    %c0_13 = arith.constant 0 : index
    %12 = vector.load %arg7[%c0_12, %c0_13] : memref<32x32xbf16, #tpu.memory_space<vmem>>, vector<32x32xbf16>
    %cst_14 = arith.constant dense<0.000000e+00> : vector<8x32xf32>
    %13 = tpu.matmul %3, %12, %cst_14 {dimension_numbers = #tpu.dot_dimension_numbers<[1], [0], [0], [1], [0, 0, 1, 1], [], []>} : vector<8x32xbf16>, vector<32x32xbf16>, vector<8x32xf32> -> vector<8x32xf32>
    %c0_15 = arith.constant 0 : index
    %c0_16 = arith.constant 0 : index
    %14 = vector.load %arg8[%c0_15, %c0_16] : memref<1x32xf32, #tpu.memory_space<vmem>>, vector<1x32xf32>
    %15 = vector.broadcast %14 : vector<1x32xf32> to vector<8x32xf32>
    %16 = arith.addf %13, %15 : vector<8x32xf32>
    %17 = arith.truncf %16 : vector<8x32xf32> to vector<8x32xbf16>
    %c0_17 = arith.constant 0 : index
    %c0_18 = arith.constant 0 : index
    %18 = vector.load %arg9[%c0_17, %c0_18] : memref<32x32xbf16, #tpu.memory_space<vmem>>, vector<32x32xbf16>
    %cst_19 = arith.constant dense<0.000000e+00> : vector<8x32xf32>
    %19 = tpu.matmul %5, %18, %cst_19 {dimension_numbers = #tpu.dot_dimension_numbers<[1], [0], [0], [1], [0, 0, 1, 1], [], []>} : vector<8x32xbf16>, vector<32x32xbf16>, vector<8x32xf32> -> vector<8x32xf32>
    %c0_20 = arith.constant 0 : index
    %c0_21 = arith.constant 0 : index
    %20 = vector.load %arg10[%c0_20, %c0_21] : memref<1x32xf32, #tpu.memory_space<vmem>>, vector<1x32xf32>
    %21 = vector.broadcast %20 : vector<1x32xf32> to vector<8x32xf32>
    %22 = arith.addf %19, %21 : vector<8x32xf32>
    %23 = arith.truncf %22 : vector<8x32xf32> to vector<8x32xbf16>
    %cst_22 = arith.constant 0.000000e+00 : f32
    %24 = vector.broadcast %cst_22 : f32 to vector<8x32xf32>
    %25 = vector.extract_strided_slice %11 {offsets = [0, 0], sizes = [8, 8], strides = [1, 1]} : vector<8x32xbf16> to vector<8x8xbf16>
    %26 = vector.extract_strided_slice %17 {offsets = [0, 0], sizes = [8, 8], strides = [1, 1]} : vector<8x32xbf16> to vector<8x8xbf16>
    %cst_23 = arith.constant dense<0.000000e+00> : vector<8x8xf32>
    %27 = tpu.matmul %25, %26, %cst_23 {dimension_numbers = #tpu.dot_dimension_numbers<[1], [1], [0], [0], [0, 0, 1, 0], [], []>} : vector<8x8xbf16>, vector<8x8xbf16>, vector<8x8xf32> -> vector<8x8xf32>
    %cst_24 = arith.constant dense<0xFF800000> : vector<8xf32>
    %28 = vector.multi_reduction <maximumf>, %27, %cst_24 [1] : vector<8x8xf32> to vector<8xf32>
    %29 = vector.shape_cast %28 : vector<8xf32> to vector<8x1xf32>
    %30 = vector.broadcast %29 : vector<8x1xf32> to vector<8x8xf32>
    %31 = arith.subf %27, %30 : vector<8x8xf32>
    %32 = math.exp %31 : vector<8x8xf32>
    %cst_25 = arith.constant dense<0.000000e+00> : vector<8xf32>
    %33 = vector.multi_reduction <add>, %32, %cst_25 [1] : vector<8x8xf32> to vector<8xf32>
    %34 = vector.shape_cast %33 : vector<8xf32> to vector<8x1xf32>
    %35 = tpu.reciprocal %34 {approx = true} : vector<8x1xf32> -> vector<8x1xf32>
    %36 = vector.broadcast %35 : vector<8x1xf32> to vector<8x8xf32>
    %37 = arith.mulf %32, %36 : vector<8x8xf32>
    %38 = arith.truncf %37 : vector<8x8xf32> to vector<8x8xbf16>
    %39 = vector.extract_strided_slice %23 {offsets = [0, 0], sizes = [8, 8], strides = [1, 1]} : vector<8x32xbf16> to vector<8x8xbf16>
    %cst_26 = arith.constant dense<0.000000e+00> : vector<8x8xf32>
    %40 = tpu.matmul %38, %39, %cst_26 {dimension_numbers = #tpu.dot_dimension_numbers<[1], [0], [0], [1], [0, 0, 1, 1], [], []>} : vector<8x8xbf16>, vector<8x8xbf16>, vector<8x8xf32> -> vector<8x8xf32>
    %41 = arith.truncf %40 : vector<8x8xf32> to vector<8x8xbf16>
    %c0_27 = arith.constant 0 : index
    %c0_28 = arith.constant 0 : index
    %c0_29 = arith.constant 0 : index
    %42 = vector.load %arg11[%c0_27, %c0_28, %c0_29] : memref<4x8x32xbf16, #tpu.memory_space<vmem>>, vector<1x8x32xbf16>
    %43 = vector.shape_cast %42 : vector<1x8x32xbf16> to vector<8x32xbf16>
    %cst_30 = arith.constant dense<0.000000e+00> : vector<8x32xf32>
    %44 = tpu.matmul %41, %43, %cst_30 {dimension_numbers = #tpu.dot_dimension_numbers<[1], [0], [0], [1], [0, 0, 1, 1], [], []>} : vector<8x8xbf16>, vector<8x32xbf16>, vector<8x32xf32> -> vector<8x32xf32>
    %45 = arith.addf %24, %44 : vector<8x32xf32>
    %46 = vector.extract_strided_slice %11 {offsets = [0, 8], sizes = [8, 8], strides = [1, 1]} : vector<8x32xbf16> to vector<8x8xbf16>
    %47 = vector.extract_strided_slice %17 {offsets = [0, 8], sizes = [8, 8], strides = [1, 1]} : vector<8x32xbf16> to vector<8x8xbf16>
    %cst_31 = arith.constant dense<0.000000e+00> : vector<8x8xf32>
    %48 = tpu.matmul %46, %47, %cst_31 {dimension_numbers = #tpu.dot_dimension_numbers<[1], [1], [0], [0], [0, 0, 1, 0], [], []>} : vector<8x8xbf16>, vector<8x8xbf16>, vector<8x8xf32> -> vector<8x8xf32>
    %cst_32 = arith.constant dense<0xFF800000> : vector<8xf32>
    %49 = vector.multi_reduction <maximumf>, %48, %cst_32 [1] : vector<8x8xf32> to vector<8xf32>
    %50 = vector.shape_cast %49 : vector<8xf32> to vector<8x1xf32>
    %51 = vector.broadcast %50 : vector<8x1xf32> to vector<8x8xf32>
    %52 = arith.subf %48, %51 : vector<8x8xf32>
    %53 = math.exp %52 : vector<8x8xf32>
    %cst_33 = arith.constant dense<0.000000e+00> : vector<8xf32>
    %54 = vector.multi_reduction <add>, %53, %cst_33 [1] : vector<8x8xf32> to vector<8xf32>
    %55 = vector.shape_cast %54 : vector<8xf32> to vector<8x1xf32>
    %56 = tpu.reciprocal %55 {approx = true} : vector<8x1xf32> -> vector<8x1xf32>
    %57 = vector.broadcast %56 : vector<8x1xf32> to vector<8x8xf32>
    %58 = arith.mulf %53, %57 : vector<8x8xf32>
    %59 = arith.truncf %58 : vector<8x8xf32> to vector<8x8xbf16>
    %60 = vector.extract_strided_slice %23 {offsets = [0, 8], sizes = [8, 8], strides = [1, 1]} : vector<8x32xbf16> to vector<8x8xbf16>
    %cst_34 = arith.constant dense<0.000000e+00> : vector<8x8xf32>
    %61 = tpu.matmul %59, %60, %cst_34 {dimension_numbers = #tpu.dot_dimension_numbers<[1], [0], [0], [1], [0, 0, 1, 1], [], []>} : vector<8x8xbf16>, vector<8x8xbf16>, vector<8x8xf32> -> vector<8x8xf32>
    %62 = arith.truncf %61 : vector<8x8xf32> to vector<8x8xbf16>
    %c1 = arith.constant 1 : index
    %c0_35 = arith.constant 0 : index
    %c0_36 = arith.constant 0 : index
    %63 = vector.load %arg11[%c1, %c0_35, %c0_36] : memref<4x8x32xbf16, #tpu.memory_space<vmem>>, vector<1x8x32xbf16>
    %64 = vector.shape_cast %63 : vector<1x8x32xbf16> to vector<8x32xbf16>
    %cst_37 = arith.constant dense<0.000000e+00> : vector<8x32xf32>
    %65 = tpu.matmul %62, %64, %cst_37 {dimension_numbers = #tpu.dot_dimension_numbers<[1], [0], [0], [1], [0, 0, 1, 1], [], []>} : vector<8x8xbf16>, vector<8x32xbf16>, vector<8x32xf32> -> vector<8x32xf32>
    %66 = arith.addf %45, %65 : vector<8x32xf32>
    %67 = vector.extract_strided_slice %11 {offsets = [0, 16], sizes = [8, 8], strides = [1, 1]} : vector<8x32xbf16> to vector<8x8xbf16>
    %68 = vector.extract_strided_slice %17 {offsets = [0, 16], sizes = [8, 8], strides = [1, 1]} : vector<8x32xbf16> to vector<8x8xbf16>
    %cst_38 = arith.constant dense<0.000000e+00> : vector<8x8xf32>
    %69 = tpu.matmul %67, %68, %cst_38 {dimension_numbers = #tpu.dot_dimension_numbers<[1], [1], [0], [0], [0, 0, 1, 0], [], []>} : vector<8x8xbf16>, vector<8x8xbf16>, vector<8x8xf32> -> vector<8x8xf32>
    %cst_39 = arith.constant dense<0xFF800000> : vector<8xf32>
    %70 = vector.multi_reduction <maximumf>, %69, %cst_39 [1] : vector<8x8xf32> to vector<8xf32>
    %71 = vector.shape_cast %70 : vector<8xf32> to vector<8x1xf32>
    %72 = vector.broadcast %71 : vector<8x1xf32> to vector<8x8xf32>
    %73 = arith.subf %69, %72 : vector<8x8xf32>
    %74 = math.exp %73 : vector<8x8xf32>
    %cst_40 = arith.constant dense<0.000000e+00> : vector<8xf32>
    %75 = vector.multi_reduction <add>, %74, %cst_40 [1] : vector<8x8xf32> to vector<8xf32>
    %76 = vector.shape_cast %75 : vector<8xf32> to vector<8x1xf32>
    %77 = tpu.reciprocal %76 {approx = true} : vector<8x1xf32> -> vector<8x1xf32>
    %78 = vector.broadcast %77 : vector<8x1xf32> to vector<8x8xf32>
    %79 = arith.mulf %74, %78 : vector<8x8xf32>
    %80 = arith.truncf %79 : vector<8x8xf32> to vector<8x8xbf16>
    %81 = vector.extract_strided_slice %23 {offsets = [0, 16], sizes = [8, 8], strides = [1, 1]} : vector<8x32xbf16> to vector<8x8xbf16>
    %cst_41 = arith.constant dense<0.000000e+00> : vector<8x8xf32>
    %82 = tpu.matmul %80, %81, %cst_41 {dimension_numbers = #tpu.dot_dimension_numbers<[1], [0], [0], [1], [0, 0, 1, 1], [], []>} : vector<8x8xbf16>, vector<8x8xbf16>, vector<8x8xf32> -> vector<8x8xf32>
    %83 = arith.truncf %82 : vector<8x8xf32> to vector<8x8xbf16>
    %c2 = arith.constant 2 : index
    %c0_42 = arith.constant 0 : index
    %c0_43 = arith.constant 0 : index
    %84 = vector.load %arg11[%c2, %c0_42, %c0_43] : memref<4x8x32xbf16, #tpu.memory_space<vmem>>, vector<1x8x32xbf16>
    %85 = vector.shape_cast %84 : vector<1x8x32xbf16> to vector<8x32xbf16>
    %cst_44 = arith.constant dense<0.000000e+00> : vector<8x32xf32>
    %86 = tpu.matmul %83, %85, %cst_44 {dimension_numbers = #tpu.dot_dimension_numbers<[1], [0], [0], [1], [0, 0, 1, 1], [], []>} : vector<8x8xbf16>, vector<8x32xbf16>, vector<8x32xf32> -> vector<8x32xf32>
    %87 = arith.addf %66, %86 : vector<8x32xf32>
    %88 = vector.extract_strided_slice %11 {offsets = [0, 24], sizes = [8, 8], strides = [1, 1]} : vector<8x32xbf16> to vector<8x8xbf16>
    %89 = vector.extract_strided_slice %17 {offsets = [0, 24], sizes = [8, 8], strides = [1, 1]} : vector<8x32xbf16> to vector<8x8xbf16>
    %cst_45 = arith.constant dense<0.000000e+00> : vector<8x8xf32>
    %90 = tpu.matmul %88, %89, %cst_45 {dimension_numbers = #tpu.dot_dimension_numbers<[1], [1], [0], [0], [0, 0, 1, 0], [], []>} : vector<8x8xbf16>, vector<8x8xbf16>, vector<8x8xf32> -> vector<8x8xf32>
    %cst_46 = arith.constant dense<0xFF800000> : vector<8xf32>
    %91 = vector.multi_reduction <maximumf>, %90, %cst_46 [1] : vector<8x8xf32> to vector<8xf32>
    %92 = vector.shape_cast %91 : vector<8xf32> to vector<8x1xf32>
    %93 = vector.broadcast %92 : vector<8x1xf32> to vector<8x8xf32>
    %94 = arith.subf %90, %93 : vector<8x8xf32>
    %95 = math.exp %94 : vector<8x8xf32>
    %cst_47 = arith.constant dense<0.000000e+00> : vector<8xf32>
    %96 = vector.multi_reduction <add>, %95, %cst_47 [1] : vector<8x8xf32> to vector<8xf32>
    %97 = vector.shape_cast %96 : vector<8xf32> to vector<8x1xf32>
    %98 = tpu.reciprocal %97 {approx = true} : vector<8x1xf32> -> vector<8x1xf32>
    %99 = vector.broadcast %98 : vector<8x1xf32> to vector<8x8xf32>
    %100 = arith.mulf %95, %99 : vector<8x8xf32>
    %101 = arith.truncf %100 : vector<8x8xf32> to vector<8x8xbf16>
    %102 = vector.extract_strided_slice %23 {offsets = [0, 24], sizes = [8, 8], strides = [1, 1]} : vector<8x32xbf16> to vector<8x8xbf16>
    %cst_48 = arith.constant dense<0.000000e+00> : vector<8x8xf32>
    %103 = tpu.matmul %101, %102, %cst_48 {dimension_numbers = #tpu.dot_dimension_numbers<[1], [0], [0], [1], [0, 0, 1, 1], [], []>} : vector<8x8xbf16>, vector<8x8xbf16>, vector<8x8xf32> -> vector<8x8xf32>
    %104 = arith.truncf %103 : vector<8x8xf32> to vector<8x8xbf16>
    %c3 = arith.constant 3 : index
    %c0_49 = arith.constant 0 : index
    %c0_50 = arith.constant 0 : index
    %105 = vector.load %arg11[%c3, %c0_49, %c0_50] : memref<4x8x32xbf16, #tpu.memory_space<vmem>>, vector<1x8x32xbf16>
    %106 = vector.shape_cast %105 : vector<1x8x32xbf16> to vector<8x32xbf16>
    %cst_51 = arith.constant dense<0.000000e+00> : vector<8x32xf32>
    %107 = tpu.matmul %104, %106, %cst_51 {dimension_numbers = #tpu.dot_dimension_numbers<[1], [0], [0], [1], [0, 0, 1, 1], [], []>} : vector<8x8xbf16>, vector<8x32xbf16>, vector<8x32xf32> -> vector<8x32xf32>
    %108 = arith.addf %87, %107 : vector<8x32xf32>
    %c0_52 = arith.constant 0 : index
    %c0_53 = arith.constant 0 : index
    %109 = vector.load %arg12[%c0_52, %c0_53] : memref<1x32xf32, #tpu.memory_space<vmem>>, vector<1x32xf32>
    %110 = vector.broadcast %109 : vector<1x32xf32> to vector<8x32xf32>
    %111 = arith.addf %108, %110 : vector<8x32xf32>
    %c0_54 = arith.constant 0 : index
    %c0_55 = arith.constant 0 : index
    %c0_56 = arith.constant 0 : index
    %112 = vector.load %arg13[%c0_54, %c0_55, %c0_56] : memref<1x8x32xf32, #tpu.memory_space<vmem>>, vector<1x8x32xf32>
    %113 = vector.shape_cast %112 : vector<1x8x32xf32> to vector<8x32xf32>
    %114 = vector.shape_cast %111 : vector<8x32xf32> to vector<1x8x32xf32>
    tpu.vector_store %arg13[%c0_54, %c0_55, %c0_56], %114 {strides = array<i32>} : memref<1x8x32xf32, #tpu.memory_space<vmem>>, vector<1x8x32xf32>,
    return
  }
  func.func @transform_0(%arg0: i32, %arg1: i32) -> (i32, i32, i32) {
    %c0_i32 = arith.constant 0 : i32
    %c0_i32_0 = arith.constant 0 : i32
    return %arg0, %arg1, %c0_i32 : i32, i32, i32
  }
  func.func @transform_1(%arg0: i32, %arg1: i32) -> (i32, i32, i32) {
    %c0_i32 = arith.constant 0 : i32
    %c0_i32_0 = arith.constant 0 : i32
    %c0_i32_1 = arith.constant 0 : i32
    return %arg0, %c0_i32, %c0_i32_0 : i32, i32, i32
  }
  func.func @transform_2(%arg0: i32, %arg1: i32) -> (i32, i32, i32) {
    %c0_i32 = arith.constant 0 : i32
    %c0_i32_0 = arith.constant 0 : i32
    %c0_i32_1 = arith.constant 0 : i32
    return %arg0, %c0_i32, %c0_i32_0 : i32, i32, i32
  }
  func.func @transform_3(%arg0: i32, %arg1: i32) -> (i32, i32) {
    %c0_i32 = arith.constant 0 : i32
    %c0_i32_0 = arith.constant 0 : i32
    %c0_i32_1 = arith.constant 0 : i32
    return %c0_i32, %c0_i32_0 : i32, i32
  }
  func.func @transform_4(%arg0: i32, %arg1: i32) -> (i32, i32) {
    %c0_i32 = arith.constant 0 : i32
    %c0_i32_0 = arith.constant 0 : i32
    %c0_i32_1 = arith.constant 0 : i32
    return %c0_i32, %c0_i32_0 : i32, i32
  }
  func.func @transform_5(%arg0: i32, %arg1: i32) -> (i32, i32) {
    %c0_i32 = arith.constant 0 : i32
    %c0_i32_0 = arith.constant 0 : i32
    %c0_i32_1 = arith.constant 0 : i32
    return %c0_i32, %c0_i32_0 : i32, i32
  }
  func.func @transform_6(%arg0: i32, %arg1: i32) -> (i32, i32) {
    %c0_i32 = arith.constant 0 : i32
    %c0_i32_0 = arith.constant 0 : i32
    %c0_i32_1 = arith.constant 0 : i32
    return %c0_i32, %c0_i32_0 : i32, i32
  }
  func.func @transform_7(%arg0: i32, %arg1: i32) -> (i32, i32) {
    %c0_i32 = arith.constant 0 : i32
    %c0_i32_0 = arith.constant 0 : i32
    %c0_i32_1 = arith.constant 0 : i32
    return %c0_i32, %c0_i32_0 : i32, i32
  }
  func.func @transform_8(%arg0: i32, %arg1: i32) -> (i32, i32) {
    %c0_i32 = arith.constant 0 : i32
    %c0_i32_0 = arith.constant 0 : i32
    %c0_i32_1 = arith.constant 0 : i32
    return %c0_i32, %c0_i32_0 : i32, i32
  }
  func.func @transform_9(%arg0: i32, %arg1: i32) -> (i32, i32, i32) {
    %c0_i32 = arith.constant 0 : i32
    %c0_i32_0 = arith.constant 0 : i32
    %c0_i32_1 = arith.constant 0 : i32
    %c0_i32_2 = arith.constant 0 : i32
    return %c0_i32, %c0_i32_0, %c0_i32_1 : i32, i32, i32
  }
  func.func @transform_10(%arg0: i32, %arg1: i32) -> (i32, i32) {
    %c0_i32 = arith.constant 0 : i32
    %c0_i32_0 = arith.constant 0 : i32
    %c0_i32_1 = arith.constant 0 : i32
    return %c0_i32, %c0_i32_0 : i32, i32
  }
  func.func @transform_11(%arg0: i32, %arg1: i32) -> (i32, i32, i32) {
    %c0_i32 = arith.constant 0 : i32
    %c0_i32_0 = arith.constant 0 : i32
    return %arg0, %arg1, %c0_i32 : i32, i32, i32
  }
}

</mosaic_0001>

<llo_original>
// kernel: tpu_custom_call.1
$region0: #{tpu_custom_call.1}
  #allocation0 [shape = 'u32[]', space=smem, size = 0x4, offset = 0x4, fixed_abs, tag = 'smem constant byte address 0x4 - core index']
  #allocation1 [shape = 'u32[144,128]{1,0:T(1,128)}', space=vmem, size = 0x12000, scoped, tag = 'internal scratch']
  %s0 = inlined_call_operand.hbm [shape: bf16[2,8,32], index: 0, kind: input, shape index: {}]
  %s1 = inlined_call_operand.hbm [shape: bf16[2,8,32], index: 1, kind: input, shape index: {}]
  %s2 = inlined_call_operand.hbm [shape: bf16[2,8,32], index: 2, kind: input, shape index: {}]
  %s3 = inlined_call_operand.hbm [shape: bf16[32,32], index: 3, kind: input, shape index: {}]
  %s4 = inlined_call_operand.vmem [shape: f32[1,32], index: 4, kind: input, shape index: {}]
  %s5 = inlined_call_operand.vmem [shape: bf16[32,32], index: 5, kind: input, shape index: {}]
  %s6 = inlined_call_operand.vmem [shape: f32[1,32], index: 6, kind: input, shape index: {}]
  %s7 = inlined_call_operand.hbm [shape: bf16[32,32], index: 7, kind: input, shape index: {}]
  %s8 = inlined_call_operand.hbm [shape: f32[1,32], index: 8, kind: input, shape index: {}]
  %s9 = inlined_call_operand.vmem [shape: bf16[4,8,32], index: 9, kind: input, shape index: {}]
  %s10 = inlined_call_operand.vmem [shape: f32[1,32], index: 10, kind: input, shape index: {}]
  %s11 = inlined_call_operand.hbm [shape: f32[2,8,32], index: 11, kind: output, shape index: {}]
  %s12 = sld [smem:[#allocation0]]
  $region101: #{tpu_custom_call.1} parent=0
    _
  %s14 = ssub.s32 1, %s12
  %s15 = scalar_select 0, %s14, %s12
  $region1: #{tpu_custom_call.1} parent=0
    #allocation2 [shape = 'u8[4096]{0}', space=vmem, size = 0x1000, scoped, tag = 'input window, operand 0']
    #allocation3 [shape = 's32[2]{0}', space=sflag, size = 0x8, scoped, tag = 'scoped memory for tpu_custom_call.1']
    #allocation4 [shape = 's32[2]{0}', space=sflag, size = 0x8, scoped, tag = 'scoped memory for tpu_custom_call.1']
    #allocation5 [shape = 'u8[4096]{0}', space=vmem, size = 0x1000, scoped, tag = 'input window, operand 1']
    #allocation6 [shape = 's32[2]{0}', space=sflag, size = 0x8, scoped, tag = 'scoped memory for tpu_custom_call.1']
    #allocation7 [shape = 'u8[4096]{0}', space=vmem, size = 0x1000, scoped, tag = 'input window, operand 2']
    #allocation8 [shape = 'u8[8192]{0}', space=vmem, size = 0x2000, scoped, tag = 'input window, operand 3, single buffered']
    #allocation9 [shape = 's32[1]{0}', space=sflag, size = 0x4, scoped, tag = 'scoped memory for tpu_custom_call.1']
    #allocation10 [shape = 'u8[8192]{0}', space=vmem, size = 0x2000, scoped, tag = 'input window, operand 7, single buffered']
    #allocation11 [shape = 'u8[512]{0}', space=vmem, size = 0x400, scoped, tag = 'input window, operand 8, single buffered']
    #allocation12 [shape = 's32[1]{0}', space=sflag, size = 0x4, scoped, tag = 'scoped memory for tpu_custom_call.1']
    #allocation13 [shape = 'u8[8192]{0}', space=vmem, size = 0x2000, scoped, tag = 'output window, operand 0']
    %16 = vsyncpa [#allocation3], 0
    %s17 = scalar_lea.sflag [#allocation3], 1
    %18 = vsyncpa %s17, 0
    %19 = vsyncpa [#allocation6], 0
    %s20 = scalar_lea.sflag [#allocation6], 1
    %21 = vsyncpa %s20, 0
    %22 = vsyncpa [#allocation9], 0
    %23 = vsyncpa [#allocation12], 0
    %24 = vsyncpa [#allocation4], 0
    %s25 = scalar_lea.sflag [#allocation4], 1
    %26 = vsyncpa %s25, 0
    loop: start=0, step=1, limit=4
    $region2: #{tpu_custom_call.1} parent=1 // loop_pre_header
      _
    $region3: #{tpu_custom_call.1} parent=1 // loop_header
      %s28 = sphi 0, %s32
      %p29 = scmp.ge.s32.totalorder %s28, 4
      %s35 = sphi 0, %s47
      %s36 = sphi 0, %s43
      %s37 = sphi 0, %s35
      %s38 = sphi 0, %s36
      %s39 = sphi 0, %s37
      %s40 = sphi 0, %s38
      %s52 = sphi 0, %s54
      %s55 = sphi 0, %s52
      %s56 = sphi 0, %s55
      %s72 = sphi 0, %s56
      %s78 = sphi 0, %s80
      %s81 = sphi 0, %s78
      %s82 = sphi 0, %s81
      %s98 = sphi 0, %s82
      %s104 = sphi 0, %s106
      %s107 = sphi 0, %s104
      %s108 = sphi 0, %s107
      %s124 = sphi 0, %s108
      %s128 = sphi 0, %s128
      %s130 = sphi 0, %s128
      %s131 = sphi 0, %s130
      %s145 = sphi 0, %s131
      %s149 = sphi 0, %s149
      %s151 = sphi 0, %s149
      %s152 = sphi 0, %s151
      %s166 = sphi 0, %s152
      %s170 = sphi 0, %s170
      %s172 = sphi 0, %s170
      %s173 = sphi 0, %s172
      %s187 = sphi 0, %s173
      %s191 = sphi 0, %s191
      %s193 = sphi 0, %s191
      %s194 = sphi 0, %s193
      %s208 = sphi 0, %s194
      %s212 = sphi 0, %s212
      %s214 = sphi 0, %s212
      %s215 = sphi 0, %s214
      %s229 = sphi 0, %s215
      %s233 = sphi 0, %s233
      %s235 = sphi 0, %s233
      %s236 = sphi 0, %s235
      %s250 = sphi 0, %s236
      %s254 = sphi 0, %s254
      %s256 = sphi 0, %s254
      %s257 = sphi 0, %s256
      %s271 = sphi 0, %s257
      %s275 = sphi 0, %s275
      %s277 = sphi 0, %s275
      %s278 = sphi 0, %s277
      %s292 = sphi 0, %s278
      %s300 = sphi 0, %s302
      %s303 = sphi 0, %s300
      %s304 = sphi 0, %s303
      %s320 = sphi 0, %s304
    $region4: #{tpu_custom_call.1} parent=1 // loop_header_branch
      %31 = sbr.rel (%p29) target = $region8
    $region5: #{tpu_custom_call.1} parent=1 // loop_body
      %s33 = ssub.s32 %s28, 1
      %s34 = ssub.s32 %s28, 2
      %s41 = sadd.s32 1, %s36
      %p42 = scmp.ge.s32.totalorder %s41, 1
      %s43 = scalar_select %p42, 0, %s41
      %s44 = sadd.s32 1, %s35
      %s45 = scalar_select %p42, %s44, %s35
      %p46 = scmp.ge.s32.totalorder %s45, 2
      %s47 = scalar_select %p46, 0, %s45
      %s48 = ssub.s32 %s35, %s47
      %s49 = ssub.s32 %s36, %s43
      %s50 = sor.u32 %s48, %s49
      %p51 = scmp.eq.s32.totalorder %s50, 0
      %s53 = sadd.s32 %s52, 1
      %s54 = scalar_select %p51, %s52, %s53
      %p57 = pneg %p51
      %p58 = scmp.eq.s32.totalorder %s28, 1
      %p59 = por %p57, %p58
      %p60 = scmp.ne.s32.totalorder %s52, %s55
      %p61 = scmp.eq.s32.totalorder %s28, 0
      %p62 = por %p60, %p61
      %p63 = scmp.ne.s32.totalorder %s52, %s55
      %p64 = scmp.eq.s32.totalorder %s33, 1
      %p65 = por %p63, %p64
      %p66 = scmp.ne.s32.totalorder %s55, %s56
      %p67 = scmp.eq.s32.totalorder %s33, 0
      %p68 = por %p66, %p67
      %p69 = scmp.ne.s32.totalorder %s55, %s56
      %p70 = scmp.eq.s32.totalorder %s34, 1
      %p71 = por %p69, %p70
      %p73 = scmp.ne.s32.totalorder %s56, %s72
      %p74 = scmp.eq.s32.totalorder %s34, 0
      %p75 = por %p73, %p74
      %s76 = ssub.s32 %s35, %s47
      %p77 = scmp.eq.s32.totalorder %s76, 0
      %s79 = sadd.s32 %s78, 1
      %s80 = scalar_select %p77, %s78, %s79
      %p83 = pneg %p77
      %p84 = scmp.eq.s32.totalorder %s28, 1
      %p85 = por %p83, %p84
      %p86 = scmp.ne.s32.totalorder %s78, %s81
      %p87 = scmp.eq.s32.totalorder %s28, 0
      %p88 = por %p86, %p87
      %p89 = scmp.ne.s32.totalorder %s78, %s81
      %p90 = scmp.eq.s32.totalorder %s33, 1
      %p91 = por %p89, %p90
      %p92 = scmp.ne.s32.totalorder %s81, %s82
      %p93 = scmp.eq.s32.totalorder %s33, 0
      %p94 = por %p92, %p93
      %p95 = scmp.ne.s32.totalorder %s81, %s82
      %p96 = scmp.eq.s32.totalorder %s34, 1
      %p97 = por %p95, %p96
      %p99 = scmp.ne.s32.totalorder %s82, %s98
      %p100 = scmp.eq.s32.totalorder %s34, 0
      %p101 = por %p99, %p100
      %s102 = ssub.s32 %s35, %s47
      %p103 = scmp.eq.s32.totalorder %s102, 0
      %s105 = sadd.s32 %s104, 1
      %s106 = scalar_select %p103, %s104, %s105
      %p109 = pneg %p103
      %p110 = scmp.eq.s32.totalorder %s28, 1
      %p111 = por %p109, %p110
      %p112 = scmp.ne.s32.totalorder %s104, %s107
      %p113 = scmp.eq.s32.totalorder %s28, 0
      %p114 = por %p112, %p113
      %p115 = scmp.ne.s32.totalorder %s104, %s107
      %p116 = scmp.eq.s32.totalorder %s33, 1
      %p117 = por %p115, %p116
      %p118 = scmp.ne.s32.totalorder %s107, %s108
      %p119 = scmp.eq.s32.totalorder %s33, 0
      %p120 = por %p118, %p119
      %p121 = scmp.ne.s32.totalorder %s107, %s108
      %p122 = scmp.eq.s32.totalorder %s34, 1
      %p123 = por %p121, %p122
      %p125 = scmp.ne.s32.totalorder %s108, %s124
      %p126 = scmp.eq.s32.totalorder %s34, 0
      %p127 = por %p125, %p126
      %s129 = sadd.s32 %s128, 1
      %p132 = scmp.eq.s32.totalorder %s28, 1
      %p133 = scmp.ne.s32.totalorder %s128, %s130
      %p134 = scmp.eq.s32.totalorder %s28, 0
      %p135 = por %p133, %p134
      %p136 = scmp.ne.s32.totalorder %s128, %s130
      %p137 = scmp.eq.s32.totalorder %s33, 1
      %p138 = por %p136, %p137
      %p139 = scmp.ne.s32.totalorder %s130, %s131
      %p140 = scmp.eq.s32.totalorder %s33, 0
      %p141 = por %p139, %p140
      %p142 = scmp.ne.s32.totalorder %s130, %s131
      %p143 = scmp.eq.s32.totalorder %s34, 1
      %p144 = por %p142, %p143
      %p146 = scmp.ne.s32.totalorder %s131, %s145
      %p147 = scmp.eq.s32.totalorder %s34, 0
      %p148 = por %p146, %p147
      %s150 = sadd.s32 %s149, 1
      %p153 = scmp.eq.s32.totalorder %s28, 1
      %p154 = scmp.ne.s32.totalorder %s149, %s151
      %p155 = scmp.eq.s32.totalorder %s28, 0
      %p156 = por %p154, %p155
      %p157 = scmp.ne.s32.totalorder %s149, %s151
      %p158 = scmp.eq.s32.totalorder %s33, 1
      %p159 = por %p157, %p158
      %p160 = scmp.ne.s32.totalorder %s151, %s152
      %p161 = scmp.eq.s32.totalorder %s33, 0
      %p162 = por %p160, %p161
      %p163 = scmp.ne.s32.totalorder %s151, %s152
      %p164 = scmp.eq.s32.totalorder %s34, 1
      %p165 = por %p163, %p164
      %p167 = scmp.ne.s32.totalorder %s152, %s166
      %p168 = scmp.eq.s32.totalorder %s34, 0
      %p169 = por %p167, %p168
      %s171 = sadd.s32 %s170, 1
      %p174 = scmp.eq.s32.totalorder %s28, 1
      %p175 = scmp.ne.s32.totalorder %s170, %s172
      %p176 = scmp.eq.s32.totalorder %s28, 0
      %p177 = por %p175, %p176
      %p178 = scmp.ne.s32.totalorder %s170, %s172
      %p179 = scmp.eq.s32.totalorder %s33, 1
      %p180 = por %p178, %p179
      %p181 = scmp.ne.s32.totalorder %s172, %s173
      %p182 = scmp.eq.s32.totalorder %s33, 0
      %p183 = por %p181, %p182
      %p184 = scmp.ne.s32.totalorder %s172, %s173
      %p185 = scmp.eq.s32.totalorder %s34, 1
      %p186 = por %p184, %p185
      %p188 = scmp.ne.s32.totalorder %s173, %s187
      %p189 = scmp.eq.s32.totalorder %s34, 0
      %p190 = por %p188, %p189
      %s192 = sadd.s32 %s191, 1
      %p195 = scmp.eq.s32.totalorder %s28, 1
      %p196 = scmp.ne.s32.totalorder %s191, %s193
      %p197 = scmp.eq.s32.totalorder %s28, 0
      %p198 = por %p196, %p197
      %p199 = scmp.ne.s32.totalorder %s191, %s193
      %p200 = scmp.eq.s32.totalorder %s33, 1
      %p201 = por %p199, %p200
      %p202 = scmp.ne.s32.totalorder %s193, %s194
      %p203 = scmp.eq.s32.totalorder %s33, 0
      %p204 = por %p202, %p203
      %p205 = scmp.ne.s32.totalorder %s193, %s194
      %p206 = scmp.eq.s32.totalorder %s34, 1
      %p207 = por %p205, %p206
      %p209 = scmp.ne.s32.totalorder %s194, %s208
      %p210 = scmp.eq.s32.totalorder %s34, 0
      %p211 = por %p209, %p210
      %s213 = sadd.s32 %s212, 1
      %p216 = scmp.eq.s32.totalorder %s28, 1
      %p217 = scmp.ne.s32.totalorder %s212, %s214
      %p218 = scmp.eq.s32.totalorder %s28, 0
      %p219 = por %p217, %p218
      %p220 = scmp.ne.s32.totalorder %s212, %s214
      %p221 = scmp.eq.s32.totalorder %s33, 1
      %p222 = por %p220, %p221
      %p223 = scmp.ne.s32.totalorder %s214, %s215
      %p224 = scmp.eq.s32.totalorder %s33, 0
      %p225 = por %p223, %p224
      %p226 = scmp.ne.s32.totalorder %s214, %s215
      %p227 = scmp.eq.s32.totalorder %s34, 1
      %p228 = por %p226, %p227
      %p230 = scmp.ne.s32.totalorder %s215, %s229
      %p231 = scmp.eq.s32.totalorder %s34, 0
      %p232 = por %p230, %p231
      %s234 = sadd.s32 %s233, 1
      %p237 = scmp.eq.s32.totalorder %s28, 1
      %p238 = scmp.ne.s32.totalorder %s233, %s235
      %p239 = scmp.eq.s32.totalorder %s28, 0
      %p240 = por %p238, %p239
      %p241 = scmp.ne.s32.totalorder %s233, %s235
      %p242 = scmp.eq.s32.totalorder %s33, 1
      %p243 = por %p241, %p242
      %p244 = scmp.ne.s32.totalorder %s235, %s236
      %p245 = scmp.eq.s32.totalorder %s33, 0
      %p246 = por %p244, %p245
      %p247 = scmp.ne.s32.totalorder %s235, %s236
      %p248 = scmp.eq.s32.totalorder %s34, 1
      %p249 = por %p247, %p248
      %p251 = scmp.ne.s32.totalorder %s236, %s250
      %p252 = scmp.eq.s32.totalorder %s34, 0
      %p253 = por %p251, %p252
      %s255 = sadd.s32 %s254, 1
      %p258 = scmp.eq.s32.totalorder %s28, 1
      %p259 = scmp.ne.s32.totalorder %s254, %s256
      %p260 = scmp.eq.s32.totalorder %s28, 0
      %p261 = por %p259, %p260
      %p262 = scmp.ne.s32.totalorder %s254, %s256
      %p263 = scmp.eq.s32.totalorder %s33, 1
      %p264 = por %p262, %p263
      %p265 = scmp.ne.s32.totalorder %s256, %s257
      %p266 = scmp.eq.s32.totalorder %s33, 0
      %p267 = por %p265, %p266
      %p268 = scmp.ne.s32.totalorder %s256, %s257
      %p269 = scmp.eq.s32.totalorder %s34, 1
      %p270 = por %p268, %p269
      %p272 = scmp.ne.s32.totalorder %s257, %s271
      %p273 = scmp.eq.s32.totalorder %s34, 0
      %p274 = por %p272, %p273
      %s276 = sadd.s32 %s275, 1
      %p279 = scmp.eq.s32.totalorder %s28, 1
      %p280 = scmp.ne.s32.totalorder %s275, %s277
      %p281 = scmp.eq.s32.totalorder %s28, 0
      %p282 = por %p280, %p281
      %p283 = scmp.ne.s32.totalorder %s275, %s277
      %p284 = scmp.eq.s32.totalorder %s33, 1
      %p285 = por %p283, %p284
      %p286 = scmp.ne.s32.totalorder %s277, %s278
      %p287 = scmp.eq.s32.totalorder %s33, 0
      %p288 = por %p286, %p287
      %p289 = scmp.ne.s32.totalorder %s277, %s278
      %p290 = scmp.eq.s32.totalorder %s34, 1
      %p291 = por %p289, %p290
      %p293 = scmp.ne.s32.totalorder %s278, %s292
      %p294 = scmp.eq.s32.totalorder %s34, 0
      %p295 = por %p293, %p294
      %s296 = ssub.s32 %s35, %s47
      %s297 = ssub.s32 %s36, %s43
      %s298 = sor.u32 %s296, %s297
      %p299 = scmp.eq.s32.totalorder %s298, 0
      %s301 = sadd.s32 %s300, 1
      %s302 = scalar_select %p299, %s300, %s301
      %p305 = pneg %p299
      %p306 = scmp.eq.s32.totalorder %s28, 1
      %p307 = por %p305, %p306
      %p308 = scmp.ne.s32.totalorder %s300, %s303
      %p309 = scmp.eq.s32.totalorder %s28, 0
      %p310 = por %p308, %p309
      %p311 = scmp.ne.s32.totalorder %s300, %s303
      %p312 = scmp.eq.s32.totalorder %s33, 1
      %p313 = por %p311, %p312
      %p314 = scmp.ne.s32.totalorder %s303, %s304
      %p315 = scmp.eq.s32.totalorder %s33, 0
      %p316 = por %p314, %p315
      %p317 = scmp.ne.s32.totalorder %s303, %s304
      %p318 = scmp.eq.s32.totalorder %s34, 1
      %p319 = por %p317, %p318
      %p321 = scmp.ne.s32.totalorder %s304, %s320
      %p322 = scmp.eq.s32.totalorder %s34, 0
      %p323 = por %p321, %p322
      %p324 = scmp.le.s32.totalorder 1, %s28
      %p325 = scmp.lt.s32.totalorder %s28, 3
      %p326 = pnand %p324, %p325
      %p327 = pneg %p326
      // Predicated region
      $region9: #{tpu_custom_call.1} parent=5 // pred_check
        _
      $region10: #{tpu_custom_call.1} parent=5 // pred_check_branch
        %329 = sbr.rel (%p326) target = $region12
      $region11: #{tpu_custom_call.1} parent=5 // pred_region
        %s330 = ssub.s32 %s28, 1
        // Predicated region
        $region13: #{tpu_custom_call.1} parent=11 // pred_check
          %p331 = pneg %p141
        $region14: #{tpu_custom_call.1} parent=11 // pred_check_branch
          %333 = sbr.rel (%p331) target = $region16
        $region15: #{tpu_custom_call.1} parent=11 // pred_region
          %s335 = ssub.s32 256, 256
          %336 = vsyncadd [#allocation9], %s335
          %s337 = sshll.u32 [#allocation8], 4
          %s338 = int_to_ptr.vmem [resolvable:$true] %s337
          %343 = dma.hbm_to_vmem [thread:$0]  %s3, 256, %s338, [#allocation9], 64, 64, 4
        $region16: #{tpu_custom_call.1} parent=11 // pred_fallthru
          _
        // Predicated region
        $region17: #{tpu_custom_call.1} parent=11 // pred_check
          %p344 = pneg %p162
        $region18: #{tpu_custom_call.1} parent=11 // pred_check_branch
          %346 = sbr.rel (%p344) target = $region20
        $region19: #{tpu_custom_call.1} parent=11 // pred_region
          _
        $region20: #{tpu_custom_call.1} parent=11 // pred_fallthru
          _
        // Predicated region
        $region21: #{tpu_custom_call.1} parent=11 // pred_check
          %p347 = pneg %p183
        $region22: #{tpu_custom_call.1} parent=11 // pred_check_branch
          %349 = sbr.rel (%p347) target = $region24
        $region23: #{tpu_custom_call.1} parent=11 // pred_region
          _
        $region24: #{tpu_custom_call.1} parent=11 // pred_fallthru
          _
        // Predicated region
        $region25: #{tpu_custom_call.1} parent=11 // pred_check
          %p350 = pneg %p204
        $region26: #{tpu_custom_call.1} parent=11 // pred_check_branch
          %352 = sbr.rel (%p350) target = $region28
        $region27: #{tpu_custom_call.1} parent=11 // pred_region
          _
        $region28: #{tpu_custom_call.1} parent=11 // pred_fallthru
          _
        // Predicated region
        $region29: #{tpu_custom_call.1} parent=11 // pred_check
          %p353 = pneg %p225
        $region30: #{tpu_custom_call.1} parent=11 // pred_check_branch
          %355 = sbr.rel (%p353) target = $region32
        $region31: #{tpu_custom_call.1} parent=11 // pred_region
          %s357 = ssub.s32 256, 256
          %358 = vsyncadd [#allocation9], %s357
          %s359 = sshll.u32 [#allocation10], 4
          %s360 = int_to_ptr.vmem [resolvable:$true] %s359
          %365 = dma.hbm_to_vmem [thread:$0]  %s7, 256, %s360, [#allocation9], 64, 64, 4
        $region32: #{tpu_custom_call.1} parent=11 // pred_fallthru
          _
        // Predicated region
        $region33: #{tpu_custom_call.1} parent=11 // pred_check
          %p366 = pneg %p246
        $region34: #{tpu_custom_call.1} parent=11 // pred_check_branch
          %368 = sbr.rel (%p366) target = $region36
        $region35: #{tpu_custom_call.1} parent=11 // pred_region
          %s370 = ssub.s32 16, 16
          %371 = vsyncadd [#allocation12], %s370
          %s373 = sshll.u32 [#allocation11], 4
          %s374 = int_to_ptr.vmem [resolvable:$true] %s373
          %376 = dma.hbm_to_vmem [thread:$0]  %s8, 16, %s374, [#allocation12]
        $region36: #{tpu_custom_call.1} parent=11 // pred_fallthru
          _
        // Predicated region
        $region37: #{tpu_custom_call.1} parent=11 // pred_check
          %p377 = pneg %p267
        $region38: #{tpu_custom_call.1} parent=11 // pred_check_branch
          %379 = sbr.rel (%p377) target = $region40
        $region39: #{tpu_custom_call.1} parent=11 // pred_region
          _
        $region40: #{tpu_custom_call.1} parent=11 // pred_fallthru
          _
        // Predicated region
        $region41: #{tpu_custom_call.1} parent=11 // pred_check
          %p380 = pneg %p288
        $region42: #{tpu_custom_call.1} parent=11 // pred_check_branch
          %382 = sbr.rel (%p380) target = $region44
        $region43: #{tpu_custom_call.1} parent=11 // pred_region
          _
        $region44: #{tpu_custom_call.1} parent=11 // pred_fallthru
          _
      $region12: #{tpu_custom_call.1} parent=5 // pred_fallthru
        _
      %p383 = scmp.lt.s32.totalorder %s28, 2
      // Predicated region
      $region45: #{tpu_custom_call.1} parent=5 // pred_check
        %p384 = pneg %p383
      $region46: #{tpu_custom_call.1} parent=5 // pred_check_branch
        %386 = sbr.rel (%p384) target = $region48
      $region47: #{tpu_custom_call.1} parent=5 // pred_region
        // Predicated region
        $region49: #{tpu_custom_call.1} parent=47 // pred_check
          %p387 = pneg %p62
        $region50: #{tpu_custom_call.1} parent=47 // pred_check_branch
          %389 = sbr.rel (%p387) target = $region52
        $region51: #{tpu_custom_call.1} parent=47 // pred_region
          %s390 = sand.u32 %s52, 1
          %s391 = scalar_lea.sflag [#allocation3], %s390
          %s392 = sand.u32 %s52, 1
          %s393 = smul.addr %s392, 4
          %s394 = scalar_lea.vmem [#allocation2], %s393
          %s396 = ssub.s32 64, 64
          %397 = vsyncadd %s391, %s396
          %s398 = sadd.s32 %s36, %s35
          %s399 = smul.addr %s398, 64
          %s400 = scalar_lea.hbm %s0, %s399
          %s402 = sshll.u32 %s394, 4
          %s403 = int_to_ptr.vmem [resolvable:$true] %s402
          %405 = dma.hbm_to_vmem [thread:$0]  %s400, 64, %s403, %s391
        $region52: #{tpu_custom_call.1} parent=47 // pred_fallthru
          _
        // Predicated region
        $region53: #{tpu_custom_call.1} parent=47 // pred_check
          %p406 = pneg %p88
        $region54: #{tpu_custom_call.1} parent=47 // pred_check_branch
          %408 = sbr.rel (%p406) target = $region56
        $region55: #{tpu_custom_call.1} parent=47 // pred_region
          %s409 = sand.u32 %s28, 1
          %s410 = scalar_lea.sflag [#allocation6], %s409
          %s411 = sand.u32 %s78, 1
          %s412 = smul.addr %s411, 4
          %s413 = scalar_lea.vmem [#allocation5], %s412
          %s415 = ssub.s32 64, 64
          %416 = vsyncadd %s410, %s415
          %s417 = smul.addr %s35, 64
          %s418 = scalar_lea.hbm %s1, %s417
          %s420 = sshll.u32 %s413, 4
          %s421 = int_to_ptr.vmem [resolvable:$true] %s420
          %423 = dma.hbm_to_vmem [thread:$0]  %s418, 64, %s421, %s410
        $region56: #{tpu_custom_call.1} parent=47 // pred_fallthru
          _
        // Predicated region
        $region57: #{tpu_custom_call.1} parent=47 // pred_check
          %p424 = pneg %p114
        $region58: #{tpu_custom_call.1} parent=47 // pred_check_branch
          %426 = sbr.rel (%p424) target = $region60
        $region59: #{tpu_custom_call.1} parent=47 // pred_region
          %s427 = sand.u32 %s28, 1
          %s428 = scalar_lea.sflag [#allocation6], %s427
          %s429 = sand.u32 %s104, 1
          %s430 = smul.addr %s429, 4
          %s431 = scalar_lea.vmem [#allocation7], %s430
          %s433 = ssub.s32 64, 64
          %434 = vsyncadd %s428, %s433
          %s435 = smul.addr %s35, 64
          %s436 = scalar_lea.hbm %s2, %s435
          %s438 = sshll.u32 %s431, 4
          %s439 = int_to_ptr.vmem [resolvable:$true] %s438
          %441 = dma.hbm_to_vmem [thread:$0]  %s436, 64, %s439, %s428
        $region60: #{tpu_custom_call.1} parent=47 // pred_fallthru
          _
      $region48: #{tpu_custom_call.1} parent=5 // pred_fallthru
        _
      %p442 = scmp.le.s32.totalorder 1, %s28
      %p443 = scmp.lt.s32.totalorder %s28, 3
      %p444 = pnand %p442, %p443
      %p445 = pneg %p444
      // Predicated region
      $region61: #{tpu_custom_call.1} parent=5 // pred_check
        _
      $region62: #{tpu_custom_call.1} parent=5 // pred_check_branch
        %447 = sbr.rel (%p444) target = $region64
      $region63: #{tpu_custom_call.1} parent=5 // pred_region
        %s448 = ssub.s32 %s28, 1
        %s449 = sand.u32 %s55, 1
        %s450 = scalar_lea.sflag [#allocation3], %s449
        %s451 = sand.u32 %s55, 1
        %s452 = smul.addr %s451, 4
        %s453 = scalar_lea.vmem [#allocation2], %s452
        // Predicated region
        $region65: #{tpu_custom_call.1} parent=63 // pred_check
          %p454 = pneg %p68
        $region66: #{tpu_custom_call.1} parent=63 // pred_check_branch
          %456 = sbr.rel (%p454) target = $region68
        $region67: #{tpu_custom_call.1} parent=63 // pred_region
          %457 = dma.done %s450, 64
        $region68: #{tpu_custom_call.1} parent=63 // pred_fallthru
          _
        %s458 = sand.u32 %s33, 1
        %s459 = scalar_lea.sflag [#allocation6], %s458
        %s460 = sand.u32 %s81, 1
        %s461 = smul.addr %s460, 4
        %s462 = scalar_lea.vmem [#allocation5], %s461
        // Predicated region
        $region69: #{tpu_custom_call.1} parent=63 // pred_check
          %p463 = pneg %p94
        $region70: #{tpu_custom_call.1} parent=63 // pred_check_branch
          %465 = sbr.rel (%p463) target = $region72
        $region71: #{tpu_custom_call.1} parent=63 // pred_region
          %466 = dma.done %s459, 64
        $region72: #{tpu_custom_call.1} parent=63 // pred_fallthru
          _
        %s467 = sand.u32 %s33, 1
        %s468 = scalar_lea.sflag [#allocation6], %s467
        %s469 = sand.u32 %s107, 1
        %s470 = smul.addr %s469, 4
        %s471 = scalar_lea.vmem [#allocation7], %s470
        // Predicated region
        $region73: #{tpu_custom_call.1} parent=63 // pred_check
          %p472 = pneg %p120
        $region74: #{tpu_custom_call.1} parent=63 // pred_check_branch
          %474 = sbr.rel (%p472) target = $region76
        $region75: #{tpu_custom_call.1} parent=63 // pred_region
          %475 = dma.done %s468, 64
        $region76: #{tpu_custom_call.1} parent=63 // pred_fallthru
          _
        // Predicated region
        $region77: #{tpu_custom_call.1} parent=63 // pred_check
          %p476 = pneg %p141
        $region78: #{tpu_custom_call.1} parent=63 // pred_check_branch
          %478 = sbr.rel (%p476) target = $region80
        $region79: #{tpu_custom_call.1} parent=63 // pred_region
          %479 = dma.done [#allocation9], 256
        $region80: #{tpu_custom_call.1} parent=63 // pred_fallthru
          _
        // Predicated region
        $region81: #{tpu_custom_call.1} parent=63 // pred_check
          %p480 = pneg %p225
        $region82: #{tpu_custom_call.1} parent=63 // pred_check_branch
          %482 = sbr.rel (%p480) target = $region84
        $region83: #{tpu_custom_call.1} parent=63 // pred_region
          %483 = dma.done [#allocation9], 256
        $region84: #{tpu_custom_call.1} parent=63 // pred_fallthru
          _
        // Predicated region
        $region85: #{tpu_custom_call.1} parent=63 // pred_check
          %p484 = pneg %p246
        $region86: #{tpu_custom_call.1} parent=63 // pred_check_branch
          %486 = sbr.rel (%p484) target = $region88
        $region87: #{tpu_custom_call.1} parent=63 // pred_region
          %487 = dma.done [#allocation12], 16
        $region88: #{tpu_custom_call.1} parent=63 // pred_fallthru
          _
        %s488 = sand.u32 %s55, 1
        %s489 = scalar_lea.sflag [#allocation3], %s488
        %s490 = sand.u32 %s55, 1
        %s491 = smul.addr %s490, 4
        %s492 = scalar_lea.vmem [#allocation2], %s491
        %p493 = pneg %p68
        %p494 = pneg %p65
        %s495 = sand.u32 %s33, 1
        %s496 = scalar_lea.sflag [#allocation6], %s495
        %s497 = sand.u32 %s81, 1
        %s498 = smul.addr %s497, 4
        %s499 = scalar_lea.vmem [#allocation5], %s498
        %p500 = pneg %p94
        %p501 = pneg %p91
        %s502 = sand.u32 %s33, 1
        %s503 = scalar_lea.sflag [#allocation6], %s502
        %s504 = sand.u32 %s107, 1
        %s505 = smul.addr %s504, 4
        %s506 = scalar_lea.vmem [#allocation7], %s505
        %p507 = pneg %p120
        %p508 = pneg %p117
        %p509 = pneg %p141
        %p510 = pneg %p138
        %p511 = pneg %p162
        %p512 = pneg %p159
        %p513 = pneg %p183
        %p514 = pneg %p180
        %p515 = pneg %p204
        %p516 = pneg %p201
        %p517 = pneg %p225
        %p518 = pneg %p222
        %p519 = pneg %p246
        %p520 = pneg %p243
        %p521 = pneg %p267
        %p522 = pneg %p264
        %p523 = pneg %p288
        %p524 = pneg %p285
        %p525 = pneg %p316
        %p526 = pneg %p313
        %s527 = sand.u32 %s303, 1
        %s528 = scalar_lea.sflag [#allocation4], %s527
        %s529 = sand.u32 %s303, 1
        %s530 = smul.addr %s529, 8
        %s531 = scalar_lea.vmem [#allocation13], %s530
        %v533 = vld [vmem:[%s453] sm:$0xf]
        %v534 = vld [vmem:[%s462] sm:$0xf]
        %v535 = vld [vmem:[%s471] sm:$0xf]
        %v536 = vld [vmem:[#allocation8] sm:$0xf]
        %v537 = vld [vmem:[#allocation8 + $0x4] sm:$0xf]
        %v538 = vld [vmem:[#allocation8 + $0x8] sm:$0xf]
        %v539 = vld [vmem:[#allocation8 + $0xc] sm:$0xf]
        %v540 = vld [vmem:[%s4] sm:$0x1]
        %v542 = vlaneseq
        %v543 = vshrl.u32 %v542, 7
        %v544 = vsub.s32 0, %v543
        %v545 = vrot.slane %v540, %v544
        %v551 = vunpack.c.l.b16 %v536
        %v552 = vunpack.c.l.b16 %v537
        %v553 = vunpack.c.l.b16 %v538
        %v554 = vunpack.c.l.b16 %v539
        %v555 = vpack.c.b16 %v552, %v551
        %v556 = vpack.c.b16 %v554, %v553
        %vm559 = vcmask 261120
        %v561 = vsel %vm559, %v533, 0
        %563 = vmatprep.subr.bf16.mxu0 0
        %564 = vmatpush1.bf16.msra.mxu0 %v555
        %565 = vmatprep.subr.bf16.mxu0 0
        %566 = vmatpush1.bf16.msra.mxu0 %v556
        %567 = vmatprep.subr.bf16.mxu0 0
        %568 = vmatpush1.bf16.msra.mxu0 0
        %569 = vmatprep.subr.bf16.mxu0 0
        %570 = vmatpush1.bf16.msra.mxu0 0
        %571 = vmatprep.subr.bf16.mxu0 0
        %572 = vmatpush1.bf16.msra.mxu0 0
        %573 = vmatprep.subr.bf16.mxu0 0
        %574 = vmatpush1.bf16.msra.mxu0 0
        %575 = vmatprep.subr.bf16.mxu0 0
        %576 = vmatpush1.bf16.msra.mxu0 0
        %577 = vmatprep.subr.bf16.mxu0 0
        %578 = vmatpush1.bf16.msra.mxu0 0
        %579 = vmatprep.subr.bf16.mxu0 0
        %580 = vmatpush1.bf16.msra.mxu0 0
        %581 = vmatprep.subr.bf16.mxu0 0
        %582 = vmatpush1.bf16.msra.mxu0 0
        %583 = vmatprep.subr.bf16.mxu0 0
        %584 = vmatpush1.bf16.msra.mxu0 0
        %585 = vmatprep.subr.bf16.mxu0 0
        %586 = vmatpush1.bf16.msra.mxu0 0
        %587 = vmatprep.subr.bf16.mxu0 0
        %588 = vmatpush1.bf16.msra.mxu0 0
        %589 = vmatprep.subr.bf16.mxu0 0
        %590 = vmatpush1.bf16.msra.mxu0 0
        %591 = vmatprep.subr.bf16.mxu0 0
        %592 = vmatpush1.bf16.msra.mxu0 0
        %593 = vmatprep.subr.bf16.mxu0 0
        %594 = vmatpush1.bf16.msra.mxu0 0
        %595 = vmatprep.mubr.bf16.mxu0 0
        %596 = vmatmul.mubr.bf16.gmra.mrb[0].mxu0 %v561
        %v597 = vpop.f32.mrb[0].mxu0
        %v598 = vadd.f32 %v545, %v597
        %v599 = vpop.f32.mrb[0].mxu0
        %v600 = vpop.f32.mrb[0].mxu0
        %v601 = vpop.f32.mrb[0].mxu0
        %602 = vdwg.mxu0
        %v603 = vpack.c.bf16 %v598, %v598
        %v604 = vld [vmem:[%s5] sm:$0xf]
        %v605 = vld [vmem:[%s5 + $0x4] sm:$0xf]
        %v606 = vld [vmem:[%s5 + $0x8] sm:$0xf]
        %v607 = vld [vmem:[%s5 + $0xc] sm:$0xf]
        %v608 = vld [vmem:[%s6] sm:$0x1]
        %v610 = vlaneseq
        %v611 = vshrl.u32 %v610, 7
        %v612 = vsub.s32 0, %v611
        %v613 = vrot.slane %v608, %v612
        %v619 = vunpack.c.l.b16 %v604
        %v620 = vunpack.c.l.b16 %v605
        %v621 = vunpack.c.l.b16 %v606
        %v622 = vunpack.c.l.b16 %v607
        %v623 = vpack.c.b16 %v620, %v619
        %v624 = vpack.c.b16 %v622, %v621
        %v628 = vsel %vm559, %v534, 0
        %630 = vmatprep.subr.bf16.mxu0 0
        %631 = vmatpush1.bf16.msra.mxu0 %v623
        %632 = vmatprep.subr.bf16.mxu0 0
        %633 = vmatpush1.bf16.msra.mxu0 %v624
        %634 = vmatprep.subr.bf16.mxu0 0
        %635 = vmatpush1.bf16.msra.mxu0 0
        %636 = vmatprep.subr.bf16.mxu0 0
        %637 = vmatpush1.bf16.msra.mxu0 0
        %638 = vmatprep.subr.bf16.mxu0 0
        %639 = vmatpush1.bf16.msra.mxu0 0
        %640 = vmatprep.subr.bf16.mxu0 0
        %641 = vmatpush1.bf16.msra.mxu0 0
        %642 = vmatprep.subr.bf16.mxu0 0
        %643 = vmatpush1.bf16.msra.mxu0 0
        %644 = vmatprep.subr.bf16.mxu0 0
        %645 = vmatpush1.bf16.msra.mxu0 0
        %646 = vmatprep.subr.bf16.mxu0 0
        %647 = vmatpush1.bf16.msra.mxu0 0
        %648 = vmatprep.subr.bf16.mxu0 0
        %649 = vmatpush1.bf16.msra.mxu0 0
        %650 = vmatprep.subr.bf16.mxu0 0
        %651 = vmatpush1.bf16.msra.mxu0 0
        %652 = vmatprep.subr.bf16.mxu0 0
        %653 = vmatpush1.bf16.msra.mxu0 0
        %654 = vmatprep.subr.bf16.mxu0 0
        %655 = vmatpush1.bf16.msra.mxu0 0
        %656 = vmatprep.subr.bf16.mxu0 0
        %657 = vmatpush1.bf16.msra.mxu0 0
        %658 = vmatprep.subr.bf16.mxu0 0
        %659 = vmatpush1.bf16.msra.mxu0 0
        %660 = vmatprep.subr.bf16.mxu0 0
        %661 = vmatpush1.bf16.msra.mxu0 0
        %662 = vmatprep.mubr.bf16.mxu0 0
        %663 = vmatmul.mubr.bf16.gmra.mrb[0].mxu0 %v628
        %v664 = vpop.f32.mrb[0].mxu0
        %v665 = vadd.f32 %v613, %v664
        %v666 = vpop.f32.mrb[0].mxu0
        %v667 = vpop.f32.mrb[0].mxu0
        %v668 = vpop.f32.mrb[0].mxu0
        %669 = vdwg.mxu0
        %v670 = vpack.c.bf16 %v665, %v665
        %v671 = vld [vmem:[#allocation10] sm:$0xf]
        %v672 = vld [vmem:[#allocation10 + $0x4] sm:$0xf]
        %v673 = vld [vmem:[#allocation10 + $0x8] sm:$0xf]
        %v674 = vld [vmem:[#allocation10 + $0xc] sm:$0xf]
        %v675 = vld [vmem:[#allocation11] sm:$0x1]
        %v677 = vlaneseq
        %v678 = vshrl.u32 %v677, 7
        %v679 = vsub.s32 0, %v678
        %v680 = vrot.slane %v675, %v679
        %v686 = vunpack.c.l.b16 %v671
        %v687 = vunpack.c.l.b16 %v672
        %v688 = vunpack.c.l.b16 %v673
        %v689 = vunpack.c.l.b16 %v674
        %v690 = vpack.c.b16 %v687, %v686
        %v691 = vpack.c.b16 %v689, %v688
        %v695 = vsel %vm559, %v535, 0
        %697 = vmatprep.subr.bf16.mxu0 0
        %698 = vmatpush1.bf16.msra.mxu0 %v690
        %699 = vmatprep.subr.bf16.mxu0 0
        %700 = vmatpush1.bf16.msra.mxu0 %v691
        %701 = vmatprep.subr.bf16.mxu0 0
        %702 = vmatpush1.bf16.msra.mxu0 0
        %703 = vmatprep.subr.bf16.mxu0 0
        %704 = vmatpush1.bf16.msra.mxu0 0
        %705 = vmatprep.subr.bf16.mxu0 0
        %706 = vmatpush1.bf16.msra.mxu0 0
        %707 = vmatprep.subr.bf16.mxu0 0
        %708 = vmatpush1.bf16.msra.mxu0 0
        %709 = vmatprep.subr.bf16.mxu0 0
        %710 = vmatpush1.bf16.msra.mxu0 0
        %711 = vmatprep.subr.bf16.mxu0 0
        %712 = vmatpush1.bf16.msra.mxu0 0
        %713 = vmatprep.subr.bf16.mxu0 0
        %714 = vmatpush1.bf16.msra.mxu0 0
        %715 = vmatprep.subr.bf16.mxu0 0
        %716 = vmatpush1.bf16.msra.mxu0 0
        %717 = vmatprep.subr.bf16.mxu0 0
        %718 = vmatpush1.bf16.msra.mxu0 0
        %719 = vmatprep.subr.bf16.mxu0 0
        %720 = vmatpush1.bf16.msra.mxu0 0
        %721 = vmatprep.subr.bf16.mxu0 0
        %722 = vmatpush1.bf16.msra.mxu0 0
        %723 = vmatprep.subr.bf16.mxu0 0
        %724 = vmatpush1.bf16.msra.mxu0 0
        %725 = vmatprep.subr.bf16.mxu0 0
        %726 = vmatpush1.bf16.msra.mxu0 0
        %727 = vmatprep.subr.bf16.mxu0 0
        %728 = vmatpush1.bf16.msra.mxu0 0
        %729 = vmatprep.mubr.bf16.mxu0 0
        %730 = vmatmul.mubr.bf16.gmra.mrb[0].mxu0 %v695
        %v731 = vpop.f32.mrb[0].mxu0
        %v732 = vadd.f32 %v680, %v731
        %v733 = vpop.f32.mrb[0].mxu0
        %v734 = vpop.f32.mrb[0].mxu0
        %v735 = vpop.f32.mrb[0].mxu0
        %736 = vdwg.mxu0
        %v737 = vpack.c.bf16 %v732, %v732
        %vm738 = vcmask 64512
        %v740 = vsel %vm738, %v603, 0
        %v743 = vsel %vm738, %v670, 0
        %745 = vmatprep.subr.bf16.mxu0 0
        %746 = vmatpush1.bf16.xpose.msra.mxu0 %v743
        %747 = vmatprep.subr.bf16.mxu0 0
        %748 = vmatpush1.bf16.xpose.msra.mxu0 0
        %749 = vmatprep.subr.bf16.mxu0 0
        %750 = vmatpush1.bf16.xpose.msra.mxu0 0
        %751 = vmatprep.subr.bf16.mxu0 0
        %752 = vmatpush1.bf16.xpose.msra.mxu0 0
        %753 = vmatprep.subr.bf16.mxu0 0
        %754 = vmatpush1.bf16.xpose.msra.mxu0 0
        %755 = vmatprep.subr.bf16.mxu0 0
        %756 = vmatpush1.bf16.xpose.msra.mxu0 0
        %757 = vmatprep.subr.bf16.mxu0 0
        %758 = vmatpush1.bf16.xpose.msra.mxu0 0
        %759 = vmatprep.subr.bf16.mxu0 0
        %760 = vmatpush1.bf16.xpose.msra.mxu0 0
        %761 = vmatprep.subr.bf16.mxu0 0
        %762 = vmatpush1.bf16.xpose.msra.mxu0 0
        %763 = vmatprep.subr.bf16.mxu0 0
        %764 = vmatpush1.bf16.xpose.msra.mxu0 0
        %765 = vmatprep.subr.bf16.mxu0 0
        %766 = vmatpush1.bf16.xpose.msra.mxu0 0
        %767 = vmatprep.subr.bf16.mxu0 0
        %768 = vmatpush1.bf16.xpose.msra.mxu0 0
        %769 = vmatprep.subr.bf16.mxu0 0
        %770 = vmatpush1.bf16.xpose.msra.mxu0 0
        %771 = vmatprep.subr.bf16.mxu0 0
        %772 = vmatpush1.bf16.xpose.msra.mxu0 0
        %773 = vmatprep.subr.bf16.mxu0 0
        %774 = vmatpush1.bf16.xpose.msra.mxu0 0
        %775 = vmatprep.subr.bf16.mxu0 0
        %776 = vmatpush1.bf16.xpose.msra.mxu0 0
        %777 = vmatprep.mubr.bf16.mxu0 0
        %778 = vmatmul.mubr.bf16.gmra.mrb[0].mxu0 %v740
        %v779 = vpop.f32.mrb[0].mxu0
        %v780 = vadd.f32 0.0, %v779
        %v781 = vpop.f32.mrb[0].mxu0
        %v782 = vpop.f32.mrb[0].mxu0
        %v783 = vpop.f32.mrb[0].mxu0
        %784 = vdwg.mxu0
        %v785 = vsel %vm738, %v780, -inf
        %786 = vmax.xlane.f32.xlu0 %v785
        %v787 = vpop.xlane.xlu0 %786
        %v788 = vsub.f32 %v780, %v787
        %v789 = vmul.f32 %v788, 1.442695
        %v790 = vpow.pop %v789
        %v791 = vsel %vm738, %v790, 0.0
        %792 = vadd.xlane.f32.xlu0 %v791
        %v793 = vpop.xlane.xlu0 %792
        %v794 = vrcp.pop %v793
        %v795 = vmul.f32 %v790, %v794
        %v796 = vpack.c.bf16 %v795, %v795
        %v798 = vsel %vm738, %v796, 0
        %vm800 = vcmask 1043456
        %v802 = vsel %vm800, %v737, 0
        %804 = vmatprep.subr.bf16.mxu0 0
        %805 = vmatpush1.bf16.msra.mxu0 %v802
        %806 = vmatprep.subr.bf16.mxu0 0
        %807 = vmatpush1.bf16.msra.mxu0 0
        %808 = vmatprep.subr.bf16.mxu0 0
        %809 = vmatpush1.bf16.msra.mxu0 0
        %810 = vmatprep.subr.bf16.mxu0 0
        %811 = vmatpush1.bf16.msra.mxu0 0
        %812 = vmatprep.subr.bf16.mxu0 0
        %813 = vmatpush1.bf16.msra.mxu0 0
        %814 = vmatprep.subr.bf16.mxu0 0
        %815 = vmatpush1.bf16.msra.mxu0 0
        %816 = vmatprep.subr.bf16.mxu0 0
        %817 = vmatpush1.bf16.msra.mxu0 0
        %818 = vmatprep.subr.bf16.mxu0 0
        %819 = vmatpush1.bf16.msra.mxu0 0
        %820 = vmatprep.subr.bf16.mxu0 0
        %821 = vmatpush1.bf16.msra.mxu0 0
        %822 = vmatprep.subr.bf16.mxu0 0
        %823 = vmatpush1.bf16.msra.mxu0 0
        %824 = vmatprep.subr.bf16.mxu0 0
        %825 = vmatpush1.bf16.msra.mxu0 0
        %826 = vmatprep.subr.bf16.mxu0 0
        %827 = vmatpush1.bf16.msra.mxu0 0
        %828 = vmatprep.subr.bf16.mxu0 0
        %829 = vmatpush1.bf16.msra.mxu0 0
        %830 = vmatprep.subr.bf16.mxu0 0
        %831 = vmatpush1.bf16.msra.mxu0 0
        %832 = vmatprep.subr.bf16.mxu0 0
        %833 = vmatpush1.bf16.msra.mxu0 0
        %834 = vmatprep.subr.bf16.mxu0 0
        %835 = vmatpush1.bf16.msra.mxu0 0
        %836 = vmatprep.mubr.bf16.mxu0 0
        %837 = vmatmul.mubr.bf16.gmra.mrb[0].mxu0 %v798
        %v838 = vpop.f32.mrb[0].mxu0
        %v839 = vadd.f32 0.0, %v838
        %v840 = vpop.f32.mrb[0].mxu0
        %v841 = vpop.f32.mrb[0].mxu0
        %v842 = vpop.f32.mrb[0].mxu0
        %843 = vdwg.mxu0
        %v844 = vpack.c.bf16 %v839, %v839
        %v845 = vld [vmem:[%s9] sm:$0xf]
        %847 = vrot.lane.b32.xlu0 %v603, 120
        %v848 = vpop.permute.xlu0 %847
        %850 = vrot.lane.b32.xlu0 %v670, 120
        %v851 = vpop.permute.xlu0 %850
        %v853 = vsel %vm738, %v848, 0
        %v856 = vsel %vm738, %v851, 0
        %858 = vmatprep.subr.bf16.mxu0 0
        %859 = vmatpush1.bf16.xpose.msra.mxu0 %v856
        %860 = vmatprep.subr.bf16.mxu0 0
        %861 = vmatpush1.bf16.xpose.msra.mxu0 0
        %862 = vmatprep.subr.bf16.mxu0 0
        %863 = vmatpush1.bf16.xpose.msra.mxu0 0
        %864 = vmatprep.subr.bf16.mxu0 0
        %865 = vmatpush1.bf16.xpose.msra.mxu0 0
        %866 = vmatprep.subr.bf16.mxu0 0
        %867 = vmatpush1.bf16.xpose.msra.mxu0 0
        %868 = vmatprep.subr.bf16.mxu0 0
        %869 = vmatpush1.bf16.xpose.msra.mxu0 0
        %870 = vmatprep.subr.bf16.mxu0 0
        %871 = vmatpush1.bf16.xpose.msra.mxu0 0
        %872 = vmatprep.subr.bf16.mxu0 0
        %873 = vmatpush1.bf16.xpose.msra.mxu0 0
        %874 = vmatprep.subr.bf16.mxu0 0
        %875 = vmatpush1.bf16.xpose.msra.mxu0 0
        %876 = vmatprep.subr.bf16.mxu0 0
        %877 = vmatpush1.bf16.xpose.msra.mxu0 0
        %878 = vmatprep.subr.bf16.mxu0 0
        %879 = vmatpush1.bf16.xpose.msra.mxu0 0
        %880 = vmatprep.subr.bf16.mxu0 0
        %881 = vmatpush1.bf16.xpose.msra.mxu0 0
        %882 = vmatprep.subr.bf16.mxu0 0
        %883 = vmatpush1.bf16.xpose.msra.mxu0 0
        %884 = vmatprep.subr.bf16.mxu0 0
        %885 = vmatpush1.bf16.xpose.msra.mxu0 0
        %886 = vmatprep.subr.bf16.mxu0 0
        %887 = vmatpush1.bf16.xpose.msra.mxu0 0
        %888 = vmatprep.subr.bf16.mxu0 0
        %889 = vmatpush1.bf16.xpose.msra.mxu0 0
        %890 = vmatprep.mubr.bf16.mxu0 0
        %891 = vmatmul.mubr.bf16.gmra.mrb[0].mxu0 %v853
        %v892 = vpop.f32.mrb[0].mxu0
        %v893 = vadd.f32 0.0, %v892
        %v894 = vpop.f32.mrb[0].mxu0
        %v895 = vpop.f32.mrb[0].mxu0
        %v896 = vpop.f32.mrb[0].mxu0
        %897 = vdwg.mxu0
        %v898 = vsel %vm738, %v893, -inf
        %899 = vmax.xlane.f32.xlu0 %v898
        %v900 = vpop.xlane.xlu0 %899
        %v901 = vsub.f32 %v893, %v900
        %v902 = vmul.f32 %v901, 1.442695
        %v903 = vpow.pop %v902
        %v904 = vsel %vm738, %v903, 0.0
        %905 = vadd.xlane.f32.xlu0 %v904
        %v906 = vpop.xlane.xlu0 %905
        %v907 = vrcp.pop %v906
        %v908 = vmul.f32 %v903, %v907
        %v909 = vpack.c.bf16 %v908, %v908
        %911 = vrot.lane.b32.xlu0 %v737, 120
        %v912 = vpop.permute.xlu0 %911
        %v914 = vsel %vm738, %v909, 0
        %v917 = vsel %vm800, %v912, 0
        %919 = vmatprep.subr.bf16.mxu0 0
        %920 = vmatpush1.bf16.msra.mxu0 %v917
        %921 = vmatprep.subr.bf16.mxu0 0
        %922 = vmatpush1.bf16.msra.mxu0 0
        %923 = vmatprep.subr.bf16.mxu0 0
        %924 = vmatpush1.bf16.msra.mxu0 0
        %925 = vmatprep.subr.bf16.mxu0 0
        %926 = vmatpush1.bf16.msra.mxu0 0
        %927 = vmatprep.subr.bf16.mxu0 0
        %928 = vmatpush1.bf16.msra.mxu0 0
        %929 = vmatprep.subr.bf16.mxu0 0
        %930 = vmatpush1.bf16.msra.mxu0 0
        %931 = vmatprep.subr.bf16.mxu0 0
        %932 = vmatpush1.bf16.msra.mxu0 0
        %933 = vmatprep.subr.bf16.mxu0 0
        %934 = vmatpush1.bf16.msra.mxu0 0
        %935 = vmatprep.subr.bf16.mxu0 0
        %936 = vmatpush1.bf16.msra.mxu0 0
        %937 = vmatprep.subr.bf16.mxu0 0
        %938 = vmatpush1.bf16.msra.mxu0 0
        %939 = vmatprep.subr.bf16.mxu0 0
        %940 = vmatpush1.bf16.msra.mxu0 0
        %941 = vmatprep.subr.bf16.mxu0 0
        %942 = vmatpush1.bf16.msra.mxu0 0
        %943 = vmatprep.subr.bf16.mxu0 0
        %944 = vmatpush1.bf16.msra.mxu0 0
        %945 = vmatprep.subr.bf16.mxu0 0
        %946 = vmatpush1.bf16.msra.mxu0 0
        %947 = vmatprep.subr.bf16.mxu0 0
        %948 = vmatpush1.bf16.msra.mxu0 0
        %949 = vmatprep.subr.bf16.mxu0 0
        %950 = vmatpush1.bf16.msra.mxu0 0
        %951 = vmatprep.mubr.bf16.mxu0 0
        %952 = vmatmul.mubr.bf16.gmra.mrb[0].mxu0 %v914
        %v953 = vpop.f32.mrb[0].mxu0
        %v954 = vadd.f32 0.0, %v953
        %v955 = vpop.f32.mrb[0].mxu0
        %v956 = vpop.f32.mrb[0].mxu0
        %v957 = vpop.f32.mrb[0].mxu0
        %958 = vdwg.mxu0
        %v959 = vpack.c.bf16 %v954, %v954
        %s960 = scalar_lea.vmem %s9, 4
        %v961 = vld [vmem:[%s960] sm:$0xf]
        %v963 = vsel %vm738, %v959, 0
        %v966 = vsel %vm800, %v961, 0
        %968 = vmatprep.subr.bf16.mxu0 0
        %969 = vmatpush1.bf16.msra.mxu0 %v966
        %970 = vmatprep.subr.bf16.mxu0 0
        %971 = vmatpush1.bf16.msra.mxu0 0
        %972 = vmatprep.subr.bf16.mxu0 0
        %973 = vmatpush1.bf16.msra.mxu0 0
        %974 = vmatprep.subr.bf16.mxu0 0
        %975 = vmatpush1.bf16.msra.mxu0 0
        %976 = vmatprep.subr.bf16.mxu0 0
        %977 = vmatpush1.bf16.msra.mxu0 0
        %978 = vmatprep.subr.bf16.mxu0 0
        %979 = vmatpush1.bf16.msra.mxu0 0
        %980 = vmatprep.subr.bf16.mxu0 0
        %981 = vmatpush1.bf16.msra.mxu0 0
        %982 = vmatprep.subr.bf16.mxu0 0
        %983 = vmatpush1.bf16.msra.mxu0 0
        %984 = vmatprep.subr.bf16.mxu0 0
        %985 = vmatpush1.bf16.msra.mxu0 0
        %986 = vmatprep.subr.bf16.mxu0 0
        %987 = vmatpush1.bf16.msra.mxu0 0
        %988 = vmatprep.subr.bf16.mxu0 0
        %989 = vmatpush1.bf16.msra.mxu0 0
        %990 = vmatprep.subr.bf16.mxu0 0
        %991 = vmatpush1.bf16.msra.mxu0 0
        %992 = vmatprep.subr.bf16.mxu0 0
        %993 = vmatpush1.bf16.msra.mxu0 0
        %994 = vmatprep.subr.bf16.mxu0 0
        %995 = vmatpush1.bf16.msra.mxu0 0
        %996 = vmatprep.subr.bf16.mxu0 0
        %997 = vmatpush1.bf16.msra.mxu0 0
        %998 = vmatprep.subr.bf16.mxu0 0
        %999 = vmatpush1.bf16.msra.mxu0 0
        %1000 = vmatprep.mubr.bf16.mxu0 0
        %1001 = vmatmul.mubr.bf16.gmra.mrb[0].mxu0 %v963
        %v1002 = vpop.f32.mrb[0].mxu0
        %v1003 = vadd.f32 0.0, %v1002
        %v1004 = vpop.f32.mrb[0].mxu0
        %v1005 = vpop.f32.mrb[0].mxu0
        %v1006 = vpop.f32.mrb[0].mxu0
        %1007 = vdwg.mxu0
        %v1009 = vsel %vm738, %v844, 0
        %v1012 = vsel %vm800, %v845, 0
        %1014 = vmatprep.subr.bf16.mxu0 0
        %1015 = vmatpush1.bf16.msra.mxu0 %v1012
        %1016 = vmatprep.subr.bf16.mxu0 0
        %1017 = vmatpush1.bf16.msra.mxu0 0
        %1018 = vmatprep.subr.bf16.mxu0 0
        %1019 = vmatpush1.bf16.msra.mxu0 0
        %1020 = vmatprep.subr.bf16.mxu0 0
        %1021 = vmatpush1.bf16.msra.mxu0 0
        %1022 = vmatprep.subr.bf16.mxu0 0
        %1023 = vmatpush1.bf16.msra.mxu0 0
        %1024 = vmatprep.subr.bf16.mxu0 0
        %1025 = vmatpush1.bf16.msra.mxu0 0
        %1026 = vmatprep.subr.bf16.mxu0 0
        %1027 = vmatpush1.bf16.msra.mxu0 0
        %1028 = vmatprep.subr.bf16.mxu0 0
        %1029 = vmatpush1.bf16.msra.mxu0 0
        %1030 = vmatprep.subr.bf16.mxu0 0
        %1031 = vmatpush1.bf16.msra.mxu0 0
        %1032 = vmatprep.subr.bf16.mxu0 0
        %1033 = vmatpush1.bf16.msra.mxu0 0
        %1034 = vmatprep.subr.bf16.mxu0 0
        %1035 = vmatpush1.bf16.msra.mxu0 0
        %1036 = vmatprep.subr.bf16.mxu0 0
        %1037 = vmatpush1.bf16.msra.mxu0 0
        %1038 = vmatprep.subr.bf16.mxu0 0
        %1039 = vmatpush1.bf16.msra.mxu0 0
        %1040 = vmatprep.subr.bf16.mxu0 0
        %1041 = vmatpush1.bf16.msra.mxu0 0
        %1042 = vmatprep.subr.bf16.mxu0 0
        %1043 = vmatpush1.bf16.msra.mxu0 0
        %1044 = vmatprep.subr.bf16.mxu0 0
        %1045 = vmatpush1.bf16.msra.mxu0 0
        %1046 = vmatprep.mubr.bf16.mxu0 0
        %1047 = vmatmul.mubr.bf16.gmra.mrb[0].mxu0 %v1009
        %v1048 = vpop.f32.mrb[0].mxu0
        %v1049 = vadd.f32 %v1003, %v1048
        %v1050 = vpop.f32.mrb[0].mxu0
        %v1051 = vpop.f32.mrb[0].mxu0
        %v1052 = vpop.f32.mrb[0].mxu0
        %1053 = vdwg.mxu0
        %1054 = vrot.lane.b32.xlu0 %v603, 112
        %v1055 = vpop.permute.xlu0 %1054
        %1056 = vrot.lane.b32.xlu0 %v670, 112
        %v1057 = vpop.permute.xlu0 %1056
        %v1059 = vsel %vm738, %v1055, 0
        %v1062 = vsel %vm738, %v1057, 0
        %1064 = vmatprep.subr.bf16.mxu0 0
        %1065 = vmatpush1.bf16.xpose.msra.mxu0 %v1062
        %1066 = vmatprep.subr.bf16.mxu0 0
        %1067 = vmatpush1.bf16.xpose.msra.mxu0 0
        %1068 = vmatprep.subr.bf16.mxu0 0
        %1069 = vmatpush1.bf16.xpose.msra.mxu0 0
        %1070 = vmatprep.subr.bf16.mxu0 0
        %1071 = vmatpush1.bf16.xpose.msra.mxu0 0
        %1072 = vmatprep.subr.bf16.mxu0 0
        %1073 = vmatpush1.bf16.xpose.msra.mxu0 0
        %1074 = vmatprep.subr.bf16.mxu0 0
        %1075 = vmatpush1.bf16.xpose.msra.mxu0 0
        %1076 = vmatprep.subr.bf16.mxu0 0
        %1077 = vmatpush1.bf16.xpose.msra.mxu0 0
        %1078 = vmatprep.subr.bf16.mxu0 0
        %1079 = vmatpush1.bf16.xpose.msra.mxu0 0
        %1080 = vmatprep.subr.bf16.mxu0 0
        %1081 = vmatpush1.bf16.xpose.msra.mxu0 0
        %1082 = vmatprep.subr.bf16.mxu0 0
        %1083 = vmatpush1.bf16.xpose.msra.mxu0 0
        %1084 = vmatprep.subr.bf16.mxu0 0
        %1085 = vmatpush1.bf16.xpose.msra.mxu0 0
        %1086 = vmatprep.subr.bf16.mxu0 0
        %1087 = vmatpush1.bf16.xpose.msra.mxu0 0
        %1088 = vmatprep.subr.bf16.mxu0 0
        %1089 = vmatpush1.bf16.xpose.msra.mxu0 0
        %1090 = vmatprep.subr.bf16.mxu0 0
        %1091 = vmatpush1.bf16.xpose.msra.mxu0 0
        %1092 = vmatprep.subr.bf16.mxu0 0
        %1093 = vmatpush1.bf16.xpose.msra.mxu0 0
        %1094 = vmatprep.subr.bf16.mxu0 0
        %1095 = vmatpush1.bf16.xpose.msra.mxu0 0
        %1096 = vmatprep.mubr.bf16.mxu0 0
        %1097 = vmatmul.mubr.bf16.gmra.mrb[0].mxu0 %v1059
        %v1098 = vpop.f32.mrb[0].mxu0
        %v1099 = vadd.f32 0.0, %v1098
        %v1100 = vpop.f32.mrb[0].mxu0
        %v1101 = vpop.f32.mrb[0].mxu0
        %v1102 = vpop.f32.mrb[0].mxu0
        %1103 = vdwg.mxu0
        %v1104 = vsel %vm738, %v1099, -inf
        %1105 = vmax.xlane.f32.xlu0 %v1104
        %v1106 = vpop.xlane.xlu0 %1105
        %v1107 = vsub.f32 %v1099, %v1106
        %v1108 = vmul.f32 %v1107, 1.442695
        %v1109 = vpow.pop %v1108
        %v1110 = vsel %vm738, %v1109, 0.0
        %1111 = vadd.xlane.f32.xlu0 %v1110
        %v1112 = vpop.xlane.xlu0 %1111
        %v1113 = vrcp.pop %v1112
        %v1114 = vmul.f32 %v1109, %v1113
        %v1115 = vpack.c.bf16 %v1114, %v1114
        %1116 = vrot.lane.b32.xlu0 %v737, 112
        %v1117 = vpop.permute.xlu0 %1116
        %v1119 = vsel %vm738, %v1115, 0
        %v1122 = vsel %vm800, %v1117, 0
        %1124 = vmatprep.subr.bf16.mxu0 0
        %1125 = vmatpush1.bf16.msra.mxu0 %v1122
        %1126 = vmatprep.subr.bf16.mxu0 0
        %1127 = vmatpush1.bf16.msra.mxu0 0
        %1128 = vmatprep.subr.bf16.mxu0 0
        %1129 = vmatpush1.bf16.msra.mxu0 0
        %1130 = vmatprep.subr.bf16.mxu0 0
        %1131 = vmatpush1.bf16.msra.mxu0 0
        %1132 = vmatprep.subr.bf16.mxu0 0
        %1133 = vmatpush1.bf16.msra.mxu0 0
        %1134 = vmatprep.subr.bf16.mxu0 0
        %1135 = vmatpush1.bf16.msra.mxu0 0
        %1136 = vmatprep.subr.bf16.mxu0 0
        %1137 = vmatpush1.bf16.msra.mxu0 0
        %1138 = vmatprep.subr.bf16.mxu0 0
        %1139 = vmatpush1.bf16.msra.mxu0 0
        %1140 = vmatprep.subr.bf16.mxu0 0
        %1141 = vmatpush1.bf16.msra.mxu0 0
        %1142 = vmatprep.subr.bf16.mxu0 0
        %1143 = vmatpush1.bf16.msra.mxu0 0
        %1144 = vmatprep.subr.bf16.mxu0 0
        %1145 = vmatpush1.bf16.msra.mxu0 0
        %1146 = vmatprep.subr.bf16.mxu0 0
        %1147 = vmatpush1.bf16.msra.mxu0 0
        %1148 = vmatprep.subr.bf16.mxu0 0
        %1149 = vmatpush1.bf16.msra.mxu0 0
        %1150 = vmatprep.subr.bf16.mxu0 0
        %1151 = vmatpush1.bf16.msra.mxu0 0
        %1152 = vmatprep.subr.bf16.mxu0 0
        %1153 = vmatpush1.bf16.msra.mxu0 0
        %1154 = vmatprep.subr.bf16.mxu0 0
        %1155 = vmatpush1.bf16.msra.mxu0 0
        %1156 = vmatprep.mubr.bf16.mxu0 0
        %1157 = vmatmul.mubr.bf16.gmra.mrb[0].mxu0 %v1119
        %v1158 = vpop.f32.mrb[0].mxu0
        %v1159 = vadd.f32 0.0, %v1158
        %v1160 = vpop.f32.mrb[0].mxu0
        %v1161 = vpop.f32.mrb[0].mxu0
        %v1162 = vpop.f32.mrb[0].mxu0
        %1163 = vdwg.mxu0
        %v1164 = vpack.c.bf16 %v1159, %v1159
        %s1165 = scalar_lea.vmem %s9, 8
        %v1166 = vld [vmem:[%s1165] sm:$0xf]
        %v1168 = vsel %vm738, %v1164, 0
        %v1171 = vsel %vm800, %v1166, 0
        %1173 = vmatprep.subr.bf16.mxu0 0
        %1174 = vmatpush1.bf16.msra.mxu0 %v1171
        %1175 = vmatprep.subr.bf16.mxu0 0
        %1176 = vmatpush1.bf16.msra.mxu0 0
        %1177 = vmatprep.subr.bf16.mxu0 0
        %1178 = vmatpush1.bf16.msra.mxu0 0
        %1179 = vmatprep.subr.bf16.mxu0 0
        %1180 = vmatpush1.bf16.msra.mxu0 0
        %1181 = vmatprep.subr.bf16.mxu0 0
        %1182 = vmatpush1.bf16.msra.mxu0 0
        %1183 = vmatprep.subr.bf16.mxu0 0
        %1184 = vmatpush1.bf16.msra.mxu0 0
        %1185 = vmatprep.subr.bf16.mxu0 0
        %1186 = vmatpush1.bf16.msra.mxu0 0
        %1187 = vmatprep.subr.bf16.mxu0 0
        %1188 = vmatpush1.bf16.msra.mxu0 0
        %1189 = vmatprep.subr.bf16.mxu0 0
        %1190 = vmatpush1.bf16.msra.mxu0 0
        %1191 = vmatprep.subr.bf16.mxu0 0
        %1192 = vmatpush1.bf16.msra.mxu0 0
        %1193 = vmatprep.subr.bf16.mxu0 0
        %1194 = vmatpush1.bf16.msra.mxu0 0
        %1195 = vmatprep.subr.bf16.mxu0 0
        %1196 = vmatpush1.bf16.msra.mxu0 0
        %1197 = vmatprep.subr.bf16.mxu0 0
        %1198 = vmatpush1.bf16.msra.mxu0 0
        %1199 = vmatprep.subr.bf16.mxu0 0
        %1200 = vmatpush1.bf16.msra.mxu0 0
        %1201 = vmatprep.subr.bf16.mxu0 0
        %1202 = vmatpush1.bf16.msra.mxu0 0
        %1203 = vmatprep.subr.bf16.mxu0 0
        %1204 = vmatpush1.bf16.msra.mxu0 0
        %1205 = vmatprep.mubr.bf16.mxu0 0
        %1206 = vmatmul.mubr.bf16.gmra.mrb[0].mxu0 %v1168
        %v1207 = vpop.f32.mrb[0].mxu0
        %v1208 = vadd.f32 0.0, %v1207
        %v1209 = vpop.f32.mrb[0].mxu0
        %v1210 = vpop.f32.mrb[0].mxu0
        %v1211 = vpop.f32.mrb[0].mxu0
        %1212 = vdwg.mxu0
        %v1213 = vadd.f32 %v1049, %v1208
        %1214 = vrot.lane.b32.xlu0 %v603, 104
        %v1215 = vpop.permute.xlu0 %1214
        %1216 = vrot.lane.b32.xlu0 %v670, 104
        %v1217 = vpop.permute.xlu0 %1216
        %v1219 = vsel %vm738, %v1215, 0
        %v1222 = vsel %vm738, %v1217, 0
        %1224 = vmatprep.subr.bf16.mxu0 0
        %1225 = vmatpush1.bf16.xpose.msra.mxu0 %v1222
        %1226 = vmatprep.subr.bf16.mxu0 0
        %1227 = vmatpush1.bf16.xpose.msra.mxu0 0
        %1228 = vmatprep.subr.bf16.mxu0 0
        %1229 = vmatpush1.bf16.xpose.msra.mxu0 0
        %1230 = vmatprep.subr.bf16.mxu0 0
        %1231 = vmatpush1.bf16.xpose.msra.mxu0 0
        %1232 = vmatprep.subr.bf16.mxu0 0
        %1233 = vmatpush1.bf16.xpose.msra.mxu0 0
        %1234 = vmatprep.subr.bf16.mxu0 0
        %1235 = vmatpush1.bf16.xpose.msra.mxu0 0
        %1236 = vmatprep.subr.bf16.mxu0 0
        %1237 = vmatpush1.bf16.xpose.msra.mxu0 0
        %1238 = vmatprep.subr.bf16.mxu0 0
        %1239 = vmatpush1.bf16.xpose.msra.mxu0 0
        %1240 = vmatprep.subr.bf16.mxu0 0
        %1241 = vmatpush1.bf16.xpose.msra.mxu0 0
        %1242 = vmatprep.subr.bf16.mxu0 0
        %1243 = vmatpush1.bf16.xpose.msra.mxu0 0
        %1244 = vmatprep.subr.bf16.mxu0 0
        %1245 = vmatpush1.bf16.xpose.msra.mxu0 0
        %1246 = vmatprep.subr.bf16.mxu0 0
        %1247 = vmatpush1.bf16.xpose.msra.mxu0 0
        %1248 = vmatprep.subr.bf16.mxu0 0
        %1249 = vmatpush1.bf16.xpose.msra.mxu0 0
        %1250 = vmatprep.subr.bf16.mxu0 0
        %1251 = vmatpush1.bf16.xpose.msra.mxu0 0
        %1252 = vmatprep.subr.bf16.mxu0 0
        %1253 = vmatpush1.bf16.xpose.msra.mxu0 0
        %1254 = vmatprep.subr.bf16.mxu0 0
        %1255 = vmatpush1.bf16.xpose.msra.mxu0 0
        %1256 = vmatprep.mubr.bf16.mxu0 0
        %1257 = vmatmul.mubr.bf16.gmra.mrb[0].mxu0 %v1219
        %v1258 = vpop.f32.mrb[0].mxu0
        %v1259 = vadd.f32 0.0, %v1258
        %v1260 = vpop.f32.mrb[0].mxu0
        %v1261 = vpop.f32.mrb[0].mxu0
        %v1262 = vpop.f32.mrb[0].mxu0
        %1263 = vdwg.mxu0
        %v1264 = vsel %vm738, %v1259, -inf
        %1265 = vmax.xlane.f32.xlu0 %v1264
        %v1266 = vpop.xlane.xlu0 %1265
        %v1267 = vsub.f32 %v1259, %v1266
        %v1268 = vmul.f32 %v1267, 1.442695
        %v1269 = vpow.pop %v1268
        %v1270 = vsel %vm738, %v1269, 0.0
        %1271 = vadd.xlane.f32.xlu0 %v1270
        %v1272 = vpop.xlane.xlu0 %1271
        %v1273 = vrcp.pop %v1272
        %v1274 = vmul.f32 %v1269, %v1273
        %v1275 = vpack.c.bf16 %v1274, %v1274
        %1276 = vrot.lane.b32.xlu0 %v737, 104
        %v1277 = vpop.permute.xlu0 %1276
        %v1279 = vsel %vm738, %v1275, 0
        %v1282 = vsel %vm800, %v1277, 0
        %1284 = vmatprep.subr.bf16.mxu0 0
        %1285 = vmatpush1.bf16.msra.mxu0 %v1282
        %1286 = vmatprep.subr.bf16.mxu0 0
        %1287 = vmatpush1.bf16.msra.mxu0 0
        %1288 = vmatprep.subr.bf16.mxu0 0
        %1289 = vmatpush1.bf16.msra.mxu0 0
        %1290 = vmatprep.subr.bf16.mxu0 0
        %1291 = vmatpush1.bf16.msra.mxu0 0
        %1292 = vmatprep.subr.bf16.mxu0 0
        %1293 = vmatpush1.bf16.msra.mxu0 0
        %1294 = vmatprep.subr.bf16.mxu0 0
        %1295 = vmatpush1.bf16.msra.mxu0 0
        %1296 = vmatprep.subr.bf16.mxu0 0
        %1297 = vmatpush1.bf16.msra.mxu0 0
        %1298 = vmatprep.subr.bf16.mxu0 0
        %1299 = vmatpush1.bf16.msra.mxu0 0
        %1300 = vmatprep.subr.bf16.mxu0 0
        %1301 = vmatpush1.bf16.msra.mxu0 0
        %1302 = vmatprep.subr.bf16.mxu0 0
        %1303 = vmatpush1.bf16.msra.mxu0 0
        %1304 = vmatprep.subr.bf16.mxu0 0
        %1305 = vmatpush1.bf16.msra.mxu0 0
        %1306 = vmatprep.subr.bf16.mxu0 0
        %1307 = vmatpush1.bf16.msra.mxu0 0
        %1308 = vmatprep.subr.bf16.mxu0 0
        %1309 = vmatpush1.bf16.msra.mxu0 0
        %1310 = vmatprep.subr.bf16.mxu0 0
        %1311 = vmatpush1.bf16.msra.mxu0 0
        %1312 = vmatprep.subr.bf16.mxu0 0
        %1313 = vmatpush1.bf16.msra.mxu0 0
        %1314 = vmatprep.subr.bf16.mxu0 0
        %1315 = vmatpush1.bf16.msra.mxu0 0
        %1316 = vmatprep.mubr.bf16.mxu0 0
        %1317 = vmatmul.mubr.bf16.gmra.mrb[0].mxu0 %v1279
        %v1318 = vpop.f32.mrb[0].mxu0
        %v1319 = vadd.f32 0.0, %v1318
        %v1320 = vpop.f32.mrb[0].mxu0
        %v1321 = vpop.f32.mrb[0].mxu0
        %v1322 = vpop.f32.mrb[0].mxu0
        %1323 = vdwg.mxu0
        %v1324 = vpack.c.bf16 %v1319, %v1319
        %s1325 = scalar_lea.vmem %s9, 12
        %v1326 = vld [vmem:[%s1325] sm:$0xf]
        %v1328 = vsel %vm738, %v1324, 0
        %v1331 = vsel %vm800, %v1326, 0
        %1333 = vmatprep.subr.bf16.mxu0 0
        %1334 = vmatpush1.bf16.msra.mxu0 %v1331
        %1335 = vmatprep.subr.bf16.mxu0 0
        %1336 = vmatpush1.bf16.msra.mxu0 0
        %1337 = vmatprep.subr.bf16.mxu0 0
        %1338 = vmatpush1.bf16.msra.mxu0 0
        %1339 = vmatprep.subr.bf16.mxu0 0
        %1340 = vmatpush1.bf16.msra.mxu0 0
        %1341 = vmatprep.subr.bf16.mxu0 0
        %1342 = vmatpush1.bf16.msra.mxu0 0
        %1343 = vmatprep.subr.bf16.mxu0 0
        %1344 = vmatpush1.bf16.msra.mxu0 0
        %1345 = vmatprep.subr.bf16.mxu0 0
        %1346 = vmatpush1.bf16.msra.mxu0 0
        %1347 = vmatprep.subr.bf16.mxu0 0
        %1348 = vmatpush1.bf16.msra.mxu0 0
        %1349 = vmatprep.subr.bf16.mxu0 0
        %1350 = vmatpush1.bf16.msra.mxu0 0
        %1351 = vmatprep.subr.bf16.mxu0 0
        %1352 = vmatpush1.bf16.msra.mxu0 0
        %1353 = vmatprep.subr.bf16.mxu0 0
        %1354 = vmatpush1.bf16.msra.mxu0 0
        %1355 = vmatprep.subr.bf16.mxu0 0
        %1356 = vmatpush1.bf16.msra.mxu0 0
        %1357 = vmatprep.subr.bf16.mxu0 0
        %1358 = vmatpush1.bf16.msra.mxu0 0
        %1359 = vmatprep.subr.bf16.mxu0 0
        %1360 = vmatpush1.bf16.msra.mxu0 0
        %1361 = vmatprep.subr.bf16.mxu0 0
        %1362 = vmatpush1.bf16.msra.mxu0 0
        %1363 = vmatprep.subr.bf16.mxu0 0
        %1364 = vmatpush1.bf16.msra.mxu0 0
        %1365 = vmatprep.mubr.bf16.mxu0 0
        %1366 = vmatmul.mubr.bf16.gmra.mrb[0].mxu0 %v1328
        %v1367 = vpop.f32.mrb[0].mxu0
        %v1368 = vadd.f32 0.0, %v1367
        %v1369 = vpop.f32.mrb[0].mxu0
        %v1370 = vpop.f32.mrb[0].mxu0
        %v1371 = vpop.f32.mrb[0].mxu0
        %1372 = vdwg.mxu0
        %v1373 = vadd.f32 %v1213, %v1368
        %v1374 = vld [vmem:[%s10] sm:$0x1]
        %v1376 = vlaneseq
        %v1377 = vshrl.u32 %v1376, 7
        %v1378 = vsub.s32 0, %v1377
        %v1379 = vrot.slane %v1374, %v1378
        %v1381 = vadd.f32 %v1373, %v1379
        %1382 = vst.msk [vmem:[%s531] sm:$0xff] %vm559, %v1381
        %s1383 = sand.u32 %s303, 1
        %s1384 = scalar_lea.sflag [#allocation4], %s1383
        %s1385 = sand.u32 %s303, 1
        %s1386 = smul.addr %s1385, 8
        %s1387 = scalar_lea.vmem [#allocation13], %s1386
        // Predicated region
        $region89: #{tpu_custom_call.1} parent=63 // pred_check
          %p1388 = pneg %p313
        $region90: #{tpu_custom_call.1} parent=63 // pred_check_branch
          %1390 = sbr.rel (%p1388) target = $region92
        $region91: #{tpu_custom_call.1} parent=63 // pred_region
          %s1392 = ssub.s32 128, 128
          %1393 = vsyncadd %s1384, %s1392
          %s1394 = sadd.s32 %s38, %s37
          %s1395 = smul.addr %s1394, 128
          %s1396 = scalar_lea.hbm %s11, %s1395
          %s1398 = sshll.u32 %s1387, 4
          %s1399 = int_to_ptr.vmem [resolvable:$true] %s1398
          %1401 = dma.vmem_to_hbm [thread:$0]  %s1399, 128, %s1396, %s1384
        $region92: #{tpu_custom_call.1} parent=63 // pred_fallthru
          _
      $region64: #{tpu_custom_call.1} parent=5 // pred_fallthru
        _
      %p1402 = scmp.le.s32.totalorder 2, %s28
      // Predicated region
      $region93: #{tpu_custom_call.1} parent=5 // pred_check
        %p1403 = pneg %p1402
      $region94: #{tpu_custom_call.1} parent=5 // pred_check_branch
        %1405 = sbr.rel (%p1403) target = $region96
      $region95: #{tpu_custom_call.1} parent=5 // pred_region
        %s1406 = ssub.s32 %s28, 2
        // Predicated region
        $region97: #{tpu_custom_call.1} parent=95 // pred_check
          %p1407 = pneg %p319
        $region98: #{tpu_custom_call.1} parent=95 // pred_check_branch
          %1409 = sbr.rel (%p1407) target = $region100
        $region99: #{tpu_custom_call.1} parent=95 // pred_region
          %s1410 = sand.u32 %s304, 1
          %s1411 = scalar_lea.sflag [#allocation4], %s1410
          %s1412 = sand.u32 %s304, 1
          %s1413 = smul.addr %s1412, 8
          %s1414 = scalar_lea.vmem [#allocation13], %s1413
          %1415 = dma.done %s1411, 128
        $region100: #{tpu_custom_call.1} parent=95 // pred_fallthru
          _
      $region96: #{tpu_custom_call.1} parent=5 // pred_fallthru
        _
    $region6: #{tpu_custom_call.1} parent=1 // loop_footer
      %s32 = sadd.s32 1, %s28
    $region7: #{tpu_custom_call.1} parent=1 // loop_footer_branch
      %27 = sbr.rel target = $region3
    $region8: #{tpu_custom_call.1} parent=1 // loop_exit
      _
    %1416 = vsyncpa [#allocation3], 1
    %s1417 = scalar_lea.sflag [#allocation3], 1
    %1418 = vsyncpa %s1417, 1
    %1419 = vsyncpa [#allocation6], 1
    %s1420 = scalar_lea.sflag [#allocation6], 1
    %1421 = vsyncpa %s1420, 1
    %1422 = vsyncpa [#allocation9], 1
    %1423 = vsyncpa [#allocation12], 1
    %1424 = vsyncpa [#allocation4], 1
    %s1425 = scalar_lea.sflag [#allocation4], 1
    %1426 = vsyncpa %s1425, 1

</llo_original>
